<compile_context>
chip_gen: v7x
topology: tpu7x:2x2x1
jax: 0.10.0
libtpu: 0.0.40
codegen_flags: <defaults>
</compile_context>

<pallas_src>
import jax
import jax.numpy as jnp
from jax import lax
from jax.experimental import pallas as pl
from jax.experimental.pallas import tpu as pltpu


# ------------------------- fused matmul + bias + ReLU kernel -------------------------

def _matmul_bias_relu_kernel(p_ref, w_ref, b_ref, o_ref):
    # p_ref: (TM, K) im2col patches; w_ref: (K, Cout) BN-folded weights; b_ref: (1, Cout).
    y = jnp.dot(p_ref[...], w_ref[...], preferred_element_type=jnp.float32)
    o_ref[...] = jnp.maximum(y + b_ref[...], 0.0)


# ----------------------------------- helpers -----------------------------------------

def _round_up(n, m):
    return ((n + m - 1) // m) * m


def _im2col_3x3(x_nhwc):
    # (B, H, W, C) -> (B*H*W, 9*C), column index = (dy*3 + dx)*C + c
    B, H, W, C = x_nhwc.shape
    xp = jnp.pad(x_nhwc, ((0, 0), (1, 1), (1, 1), (0, 0)))
    cols = jnp.stack(
        [xp[:, dy:dy + H, dx:dx + W, :] for dy in range(3) for dx in range(3)],
        axis=3)                                        # (B, H, W, 9, C)
    return cols.reshape(B * H * W, 9 * C)


# ----------------------- Conv2d(3x3) + BatchNorm(eval) + ReLU ------------------------

def conv_bn_relu(x_nhwc, w, b, gamma, beta, mean, var, *, eps=1e-5, tile_m=256):
    B, H, W, Cin = x_nhwc.shape
    Cout = w.shape[-1]
    K = 9 * Cin
    M = B * H * W
    patches = _im2col_3x3(x_nhwc)                      # (M, K)

    # Fold eval-mode BatchNorm into the conv weights / bias (all per-channel work hoisted
    # out of the kernel):  BN(conv(x) + b) = conv(x)*scale + ((b - mean)*scale + beta)
    scale = gamma * lax.rsqrt(var + eps)               # (Cout,)
    wmat = w.reshape(K, Cout) * scale[None, :]
    bias = ((b - mean) * scale + beta).reshape(1, Cout)

    # Pad contraction dim to a sublane multiple and M to the tile size.
    Kp = _round_up(K, 8)
    if Kp != K:
        patches = jnp.pad(patches, ((0, 0), (0, Kp - K)))
        wmat = jnp.pad(wmat, ((0, Kp - K), (0, 0)))
    tile_m = min(tile_m, _round_up(M, 8))
    Mp = _round_up(M, tile_m)
    if Mp != M:
        patches = jnp.pad(patches, ((0, Mp - M), (0, 0)))

    out = pl.pallas_call(
        _matmul_bias_relu_kernel,
        out_shape=jax.ShapeDtypeStruct((Mp, Cout), jnp.float32),
        grid=(Mp // tile_m,),
        in_specs=[
            pl.BlockSpec((tile_m, Kp), lambda i: (i, 0)),
            pl.BlockSpec((Kp, Cout), lambda i: (0, 0)),
            pl.BlockSpec((1, Cout), lambda i: (0, 0)),
        ],
        out_specs=pl.BlockSpec((tile_m, Cout), lambda i: (i, 0)),
        compiler_params=pltpu.CompilerParams(
            dimension_semantics=("parallel",),          # independent M tiles -> v7x 2-TC shard
            vmem_limit_bytes=32 * 1024 * 1024),         # explicit, < v7x 64 MiB physical
    )(patches, wmat, bias)
    return out[:M].reshape(B, H, W, Cout)


# --------------------------------- module forward ------------------------------------

def encoder_layers_forward(x_nchw, params):
    x = jnp.transpose(x_nchw, (0, 2, 3, 1))            # NCHW -> NHWC
    x = conv_bn_relu(x, params['conv1_w'], params['conv1_b'], *params['bn1'])
    # nn.Dropout: identity at inference (no-op)
    x = conv_bn_relu(x, params['conv2_w'], params['conv2_b'], *params['bn2'])
    # nn.Dropout: identity at inference (no-op)
    return jnp.transpose(x, (0, 3, 1, 2))               # NHWC -> NCHW (PyTorch layout)


# ------------------------------- pure-JAX reference ----------------------------------

def _ref_block(x, w, b, gamma, beta, mean, var, eps=1e-5):
    y = lax.conv_general_dilated(x, w, (1, 1), 'SAME',
                                 dimension_numbers=('NHWC', 'HWIO', 'NHWC'))
    y = y + b
    y = (y - mean) * lax.rsqrt(var + eps) * gamma + beta
    return jnp.maximum(y, 0.0)


def reference_forward(x_nchw, params):
    x = jnp.transpose(x_nchw, (0, 2, 3, 1))
    x = _ref_block(x, params['conv1_w'], params['conv1_b'], *params['bn1'])
    x = _ref_block(x, params['conv2_w'], params['conv2_b'], *params['bn2'])
    return jnp.transpose(x, (0, 3, 1, 2))


# ----------------------------------- param init --------------------------------------

def init_params(key, in_channel, cnn_filters):
    k = jax.random.split(key, 6)

    def conv_w(kk, cin, cout):
        fan_in = 9 * cin
        return jax.random.normal(kk, (3, 3, cin, cout), jnp.float32) / (fan_in ** 0.5)

    def bn(kk, c):
        kg, kb, km, kv = jax.random.split(kk, 4)
        gamma = 1.0 + 0.2 * jax.random.normal(kg, (c,), jnp.float32)
        beta = 0.1 * jax.random.normal(kb, (c,), jnp.float32)
        mean = 0.1 * jax.random.normal(km, (c,), jnp.float32)
        var = jnp.abs(1.0 + 0.2 * jax.random.normal(kv, (c,), jnp.float32)) + 1e-3
        return (gamma, beta, mean, var)

    return dict(
        conv1_w=conv_w(k[0], in_channel, cnn_filters),
        conv1_b=0.05 * jax.random.normal(k[1], (cnn_filters,), jnp.float32),
        bn1=bn(k[2], cnn_filters),
        conv2_w=conv_w(k[3], cnn_filters, cnn_filters),
        conv2_b=0.05 * jax.random.normal(k[4], (cnn_filters,), jnp.float32),
        bn2=bn(k[5], cnn_filters),
    )


if __name__ == "__main__":
    # Small shapes consistent with the module: batch=2, in_channel=4, 16x16 spectrogram
    # patch, cnn_filters=64.
    B, Cin, H, W = 2, 4, 16, 16
    cnn_filters = 64

    key = jax.random.PRNGKey(0)
    kx, kp = jax.random.split(key)
    x = jax.random.normal(kx, (B, Cin, H, W), jnp.float32)     # NCHW (PyTorch input)
    params = init_params(kp, Cin, cnn_filters)

    fwd = jax.jit(encoder_layers_forward)
    y = jax.block_until_ready(fwd(x, params))

    assert y.shape == (B, cnn_filters, H, W), y.shape
    assert bool(jnp.all(jnp.isfinite(y)))
    assert bool(jnp.all(y >= 0.0))                              # ReLU output

    y_ref = jax.block_until_ready(reference_forward(x, params))
    max_err = float(jnp.max(jnp.abs(y - y_ref)))
    assert max_err < 1e-1, f"max abs error vs reference: {max_err}"

    print("KERNEL_OK")
</pallas_src>

<mosaic_0001>
module attributes {stable_mosaic.version = 11 : i64} {
  func.func @_matmul_bias_relu_kernel(%arg0: i32, %arg1: memref<256x40xf32, #tpu.memory_space<vmem>>, %arg2: memref<40x64xf32, #tpu.memory_space<vmem>>, %arg3: memref<1x64xf32, #tpu.memory_space<vmem>>, %arg4: memref<256x64xf32, #tpu.memory_space<vmem>>) attributes {dimension_semantics = [#tpu.dimension_semantics<parallel>], iteration_bounds = array<i64: 2>, scalar_prefetch = 0 : i64, scratch_operands = 0 : i64, tpu.core_type = #tpu.core_type<tc>, window_params = [{transform_indices = @transform_0, window_bounds = array<i64: 256, 40>}, {pipeline_mode = #tpu.pipeline_mode<synchronous>, transform_indices = @transform_1, window_bounds = array<i64: 40, 64>}, {pipeline_mode = #tpu.pipeline_mode<synchronous>, transform_indices = @transform_2, window_bounds = array<i64: 1, 64>}, {transform_indices = @transform_3, window_bounds = array<i64: 256, 64>}]} {
    %c0 = arith.constant 0 : index
    %c0_0 = arith.constant 0 : index
    %0 = vector.load %arg1[%c0, %c0_0] : memref<256x40xf32, #tpu.memory_space<vmem>>, vector<256x40xf32>
    %c0_1 = arith.constant 0 : index
    %c0_2 = arith.constant 0 : index
    %1 = vector.load %arg2[%c0_1, %c0_2] : memref<40x64xf32, #tpu.memory_space<vmem>>, vector<40x64xf32>
    %cst = arith.constant dense<0.000000e+00> : vector<256x64xf32>
    %2 = tpu.matmul %0, %1, %cst {dimension_numbers = #tpu.dot_dimension_numbers<[1], [0], [0], [1], [0, 0, 1, 1], [], []>} : vector<256x40xf32>, vector<40x64xf32>, vector<256x64xf32> -> vector<256x64xf32>
    %c0_3 = arith.constant 0 : index
    %c0_4 = arith.constant 0 : index
    %3 = vector.load %arg3[%c0_3, %c0_4] : memref<1x64xf32, #tpu.memory_space<vmem>>, vector<1x64xf32>
    %4 = vector.broadcast %3 : vector<1x64xf32> to vector<256x64xf32>
    %5 = arith.addf %2, %4 : vector<256x64xf32>
    %cst_5 = arith.constant 0.000000e+00 : f32
    %6 = vector.broadcast %cst_5 : f32 to vector<256x64xf32>
    %7 = arith.maximumf %5, %6 : vector<256x64xf32>
    %c0_6 = arith.constant 0 : index
    %c0_7 = arith.constant 0 : index
    %8 = vector.load %arg4[%c0_6, %c0_7] : memref<256x64xf32, #tpu.memory_space<vmem>>, vector<256x64xf32>
    tpu.vector_store %arg4[%c0_6, %c0_7], %7 {strides = array<i32>} : memref<256x64xf32, #tpu.memory_space<vmem>>, vector<256x64xf32>,
    return
  }
  func.func @transform_0(%arg0: i32) -> (i32, i32) {
    %c0_i32 = arith.constant 0 : i32
    %c0_i32_0 = arith.constant 0 : i32
    return %arg0, %c0_i32 : i32, i32
  }
  func.func @transform_1(%arg0: i32) -> (i32, i32) {
    %c0_i32 = arith.constant 0 : i32
    %c0_i32_0 = arith.constant 0 : i32
    %c0_i32_1 = arith.constant 0 : i32
    return %c0_i32, %c0_i32_0 : i32, i32
  }
  func.func @transform_2(%arg0: i32) -> (i32, i32) {
    %c0_i32 = arith.constant 0 : i32
    %c0_i32_0 = arith.constant 0 : i32
    %c0_i32_1 = arith.constant 0 : i32
    return %c0_i32, %c0_i32_0 : i32, i32
  }
  func.func @transform_3(%arg0: i32) -> (i32, i32) {
    %c0_i32 = arith.constant 0 : i32
    %c0_i32_0 = arith.constant 0 : i32
    return %arg0, %c0_i32 : i32, i32
  }
}

module attributes {stable_mosaic.version = 11 : i64} {
  func.func @_matmul_bias_relu_kernel(%arg0: i32, %arg1: memref<256x576xf32, #tpu.memory_space<vmem>>, %arg2: memref<576x64xf32, #tpu.memory_space<vmem>>, %arg3: memref<1x64xf32, #tpu.memory_space<vmem>>, %arg4: memref<256x64xf32, #tpu.memory_space<vmem>>) attributes {dimension_semantics = [#tpu.dimension_semantics<parallel>], iteration_bounds = array<i64: 2>, scalar_prefetch = 0 : i64, scratch_operands = 0 : i64, tpu.core_type = #tpu.core_type<tc>, window_params = [{transform_indices = @transform_0, window_bounds = array<i64: 256, 576>}, {pipeline_mode = #tpu.pipeline_mode<synchronous>, transform_indices = @transform_1, window_bounds = array<i64: 576, 64>}, {pipeline_mode = #tpu.pipeline_mode<synchronous>, transform_indices = @transform_2, window_bounds = array<i64: 1, 64>}, {transform_indices = @transform_3, window_bounds = array<i64: 256, 64>}]} {
    %c0 = arith.constant 0 : index
    %c0_0 = arith.constant 0 : index
    %0 = vector.load %arg1[%c0, %c0_0] : memref<256x576xf32, #tpu.memory_space<vmem>>, vector<256x576xf32>
    %c0_1 = arith.constant 0 : index
    %c0_2 = arith.constant 0 : index
    %1 = vector.load %arg2[%c0_1, %c0_2] : memref<576x64xf32, #tpu.memory_space<vmem>>, vector<576x64xf32>
    %cst = arith.constant dense<0.000000e+00> : vector<256x64xf32>
    %2 = tpu.matmul %0, %1, %cst {dimension_numbers = #tpu.dot_dimension_numbers<[1], [0], [0], [1], [0, 0, 1, 1], [], []>} : vector<256x576xf32>, vector<576x64xf32>, vector<256x64xf32> -> vector<256x64xf32>
    %c0_3 = arith.constant 0 : index
    %c0_4 = arith.constant 0 : index
    %3 = vector.load %arg3[%c0_3, %c0_4] : memref<1x64xf32, #tpu.memory_space<vmem>>, vector<1x64xf32>
    %4 = vector.broadcast %3 : vector<1x64xf32> to vector<256x64xf32>
    %5 = arith.addf %2, %4 : vector<256x64xf32>
    %cst_5 = arith.constant 0.000000e+00 : f32
    %6 = vector.broadcast %cst_5 : f32 to vector<256x64xf32>
    %7 = arith.maximumf %5, %6 : vector<256x64xf32>
    %c0_6 = arith.constant 0 : index
    %c0_7 = arith.constant 0 : index
    %8 = vector.load %arg4[%c0_6, %c0_7] : memref<256x64xf32, #tpu.memory_space<vmem>>, vector<256x64xf32>
    tpu.vector_store %arg4[%c0_6, %c0_7], %7 {strides = array<i32>} : memref<256x64xf32, #tpu.memory_space<vmem>>, vector<256x64xf32>,
    return
  }
  func.func @transform_0(%arg0: i32) -> (i32, i32) {
    %c0_i32 = arith.constant 0 : i32
    %c0_i32_0 = arith.constant 0 : i32
    return %arg0, %c0_i32 : i32, i32
  }
  func.func @transform_1(%arg0: i32) -> (i32, i32) {
    %c0_i32 = arith.constant 0 : i32
    %c0_i32_0 = arith.constant 0 : i32
    %c0_i32_1 = arith.constant 0 : i32
    return %c0_i32, %c0_i32_0 : i32, i32
  }
  func.func @transform_2(%arg0: i32) -> (i32, i32) {
    %c0_i32 = arith.constant 0 : i32
    %c0_i32_0 = arith.constant 0 : i32
    %c0_i32_1 = arith.constant 0 : i32
    return %c0_i32, %c0_i32_0 : i32, i32
  }
  func.func @transform_3(%arg0: i32) -> (i32, i32) {
    %c0_i32 = arith.constant 0 : i32
    %c0_i32_0 = arith.constant 0 : i32
    return %arg0, %c0_i32 : i32, i32
  }
}

</mosaic_0001>

<llo_original>
// kernel: encoder_layers_forward.2
$region0: #{encoder_layers_forward.2}
  #allocation0 [shape = 'u32[]', space=smem, size = 0x4, offset = 0x4, fixed_abs, tag = 'smem constant byte address 0x4 - core index']
  #allocation1 [shape = 'u32[144,128]{1,0:T(1,128)}', space=vmem, size = 0x12000, scoped, tag = 'internal scratch']
  %s0 = inlined_call_operand.vmem [shape: f32[512,40], index: 0, kind: input, shape index: {}]
  %s1 = inlined_call_operand.vmem [shape: f32[40,64], index: 1, kind: input, shape index: {}]
  %s2 = inlined_call_operand.vmem [shape: f32[1,64], index: 2, kind: input, shape index: {}]
  %s3 = inlined_call_operand.vmem [shape: f32[512,64], index: 3, kind: output, shape index: {}]
  %s4 = sld [smem:[#allocation0]]
  $region45: #{encoder_layers_forward.2} parent=0
    _
  %s6 = ssub.s32 1, %s4
  %s7 = scalar_select 0, %s6, %s4
  loop: start=0, step=1, limit=4
  $region2: #{encoder_layers_forward.2} parent=0 // loop_pre_header
    _
  $region3: #{encoder_layers_forward.2} parent=0 // loop_header
    %s9 = sphi 0, %s13
    %p10 = scmp.ge.s32.totalorder %s9, 4
    %s19 = sphi 0, %s21
    %s22 = sphi 0, %s19
    %s23 = sphi 0, %s22
    %s39 = sphi 0, %s23
    %s43 = sphi 0, %s43
    %s45 = sphi 0, %s43
    %s46 = sphi 0, %s45
    %s60 = sphi 0, %s46
    %s64 = sphi 0, %s64
    %s66 = sphi 0, %s64
    %s67 = sphi 0, %s66
    %s81 = sphi 0, %s67
    %s87 = sphi 0, %s89
    %s90 = sphi 0, %s87
    %s91 = sphi 0, %s90
    %s107 = sphi 0, %s91
  $region4: #{encoder_layers_forward.2} parent=0 // loop_header_branch
    %12 = sbr.rel (%p10) target = $region8
  $region5: #{encoder_layers_forward.2} parent=0 // loop_body
    %s14 = ssub.s32 %s9, 1
    %s15 = ssub.s32 %s9, 2
    %s16 = sadd.s32 %s9, 1
    %s17 = ssub.s32 %s9, %s16
    %p18 = scmp.eq.s32.totalorder %s17, 0
    %s20 = sadd.s32 %s19, 1
    %s21 = scalar_select %p18, %s19, %s20
    %p24 = pneg %p18
    %p25 = scmp.eq.s32.totalorder %s9, 1
    %p26 = por %p24, %p25
    %p27 = scmp.ne.s32.totalorder %s19, %s22
    %p28 = scmp.eq.s32.totalorder %s9, 0
    %p29 = por %p27, %p28
    %p30 = scmp.ne.s32.totalorder %s19, %s22
    %p31 = scmp.eq.s32.totalorder %s14, 1
    %p32 = por %p30, %p31
    %p33 = scmp.ne.s32.totalorder %s22, %s23
    %p34 = scmp.eq.s32.totalorder %s14, 0
    %p35 = por %p33, %p34
    %p36 = scmp.ne.s32.totalorder %s22, %s23
    %p37 = scmp.eq.s32.totalorder %s15, 1
    %p38 = por %p36, %p37
    %p40 = scmp.ne.s32.totalorder %s23, %s39
    %p41 = scmp.eq.s32.totalorder %s15, 0
    %p42 = por %p40, %p41
    %s44 = sadd.s32 %s43, 1
    %p47 = scmp.eq.s32.totalorder %s9, 1
    %p48 = scmp.ne.s32.totalorder %s43, %s45
    %p49 = scmp.eq.s32.totalorder %s9, 0
    %p50 = por %p48, %p49
    %p51 = scmp.ne.s32.totalorder %s43, %s45
    %p52 = scmp.eq.s32.totalorder %s14, 1
    %p53 = por %p51, %p52
    %p54 = scmp.ne.s32.totalorder %s45, %s46
    %p55 = scmp.eq.s32.totalorder %s14, 0
    %p56 = por %p54, %p55
    %p57 = scmp.ne.s32.totalorder %s45, %s46
    %p58 = scmp.eq.s32.totalorder %s15, 1
    %p59 = por %p57, %p58
    %p61 = scmp.ne.s32.totalorder %s46, %s60
    %p62 = scmp.eq.s32.totalorder %s15, 0
    %p63 = por %p61, %p62
    %s65 = sadd.s32 %s64, 1
    %p68 = scmp.eq.s32.totalorder %s9, 1
    %p69 = scmp.ne.s32.totalorder %s64, %s66
    %p70 = scmp.eq.s32.totalorder %s9, 0
    %p71 = por %p69, %p70
    %p72 = scmp.ne.s32.totalorder %s64, %s66
    %p73 = scmp.eq.s32.totalorder %s14, 1
    %p74 = por %p72, %p73
    %p75 = scmp.ne.s32.totalorder %s66, %s67
    %p76 = scmp.eq.s32.totalorder %s14, 0
    %p77 = por %p75, %p76
    %p78 = scmp.ne.s32.totalorder %s66, %s67
    %p79 = scmp.eq.s32.totalorder %s15, 1
    %p80 = por %p78, %p79
    %p82 = scmp.ne.s32.totalorder %s67, %s81
    %p83 = scmp.eq.s32.totalorder %s15, 0
    %p84 = por %p82, %p83
    %s85 = ssub.s32 %s9, %s16
    %p86 = scmp.eq.s32.totalorder %s85, 0
    %s88 = sadd.s32 %s87, 1
    %s89 = scalar_select %p86, %s87, %s88
    %p92 = pneg %p86
    %p93 = scmp.eq.s32.totalorder %s9, 1
    %p94 = por %p92, %p93
    %p95 = scmp.ne.s32.totalorder %s87, %s90
    %p96 = scmp.eq.s32.totalorder %s9, 0
    %p97 = por %p95, %p96
    %p98 = scmp.ne.s32.totalorder %s87, %s90
    %p99 = scmp.eq.s32.totalorder %s14, 1
    %p100 = por %p98, %p99
    %p101 = scmp.ne.s32.totalorder %s90, %s91
    %p102 = scmp.eq.s32.totalorder %s14, 0
    %p103 = por %p101, %p102
    %p104 = scmp.ne.s32.totalorder %s90, %s91
    %p105 = scmp.eq.s32.totalorder %s15, 1
    %p106 = por %p104, %p105
    %p108 = scmp.ne.s32.totalorder %s91, %s107
    %p109 = scmp.eq.s32.totalorder %s15, 0
    %p110 = por %p108, %p109
    %p111 = scmp.le.s32.totalorder 1, %s9
    %p112 = scmp.lt.s32.totalorder %s9, 3
    %p113 = pnand %p111, %p112
    %p114 = pneg %p113
    // Predicated region
    $region9: #{encoder_layers_forward.2} parent=5 // pred_check
      _
    $region10: #{encoder_layers_forward.2} parent=5 // pred_check_branch
      %116 = sbr.rel (%p113) target = $region12
    $region11: #{encoder_layers_forward.2} parent=5 // pred_region
      %s117 = ssub.s32 %s9, 1
      // Predicated region
      $region13: #{encoder_layers_forward.2} parent=11 // pred_check
        %p118 = pneg %p56
      $region14: #{encoder_layers_forward.2} parent=11 // pred_check_branch
        %120 = sbr.rel (%p118) target = $region16
      $region15: #{encoder_layers_forward.2} parent=11 // pred_region
        _
      $region16: #{encoder_layers_forward.2} parent=11 // pred_fallthru
        _
      // Predicated region
      $region17: #{encoder_layers_forward.2} parent=11 // pred_check
        %p121 = pneg %p77
      $region18: #{encoder_layers_forward.2} parent=11 // pred_check_branch
        %123 = sbr.rel (%p121) target = $region20
      $region19: #{encoder_layers_forward.2} parent=11 // pred_region
        _
      $region20: #{encoder_layers_forward.2} parent=11 // pred_fallthru
        _
    $region12: #{encoder_layers_forward.2} parent=5 // pred_fallthru
      _
    %p124 = scmp.lt.s32.totalorder %s9, 2
    // Predicated region
    $region21: #{encoder_layers_forward.2} parent=5 // pred_check
      %p125 = pneg %p124
    $region22: #{encoder_layers_forward.2} parent=5 // pred_check_branch
      %127 = sbr.rel (%p125) target = $region24
    $region23: #{encoder_layers_forward.2} parent=5 // pred_region
      // Predicated region
      $region25: #{encoder_layers_forward.2} parent=23 // pred_check
        %p128 = pneg %p29
      $region26: #{encoder_layers_forward.2} parent=23 // pred_check_branch
        %130 = sbr.rel (%p128) target = $region28
      $region27: #{encoder_layers_forward.2} parent=23 // pred_region
        %s131 = smul.u32 32, %s9
        %p132 = scmp.lt.s32.totalorder %s131, 63
        %s133 = scalar_select %p132, %s131, 63
        %s134 = smul.addr %s133, 8
        %s135 = scalar_lea.vmem %s0, %s134
        %s136 = smul.u32 32, %s9
      $region28: #{encoder_layers_forward.2} parent=23 // pred_fallthru
        _
    $region24: #{encoder_layers_forward.2} parent=5 // pred_fallthru
      _
    %p137 = scmp.le.s32.totalorder 1, %s9
    %p138 = scmp.lt.s32.totalorder %s9, 3
    %p139 = pnand %p137, %p138
    %p140 = pneg %p139
    // Predicated region
    $region29: #{encoder_layers_forward.2} parent=5 // pred_check
      _
    $region30: #{encoder_layers_forward.2} parent=5 // pred_check_branch
      %142 = sbr.rel (%p139) target = $region32
    $region31: #{encoder_layers_forward.2} parent=5 // pred_region
      %s143 = ssub.s32 %s9, 1
      %s144 = smul.u32 32, %s14
      %p145 = scmp.lt.s32.totalorder %s144, 63
      %s146 = scalar_select %p145, %s144, 63
      %s147 = smul.addr %s146, 8
      %s148 = scalar_lea.vmem %s0, %s147
      %p149 = pneg %p35
      %p150 = pneg %p32
      %p151 = pneg %p56
      %p152 = pneg %p53
      %p153 = pneg %p77
      %p154 = pneg %p74
      %p155 = pneg %p103
      %p156 = pneg %p100
      %s157 = smul.u32 32, %s14
      %p158 = scmp.lt.s32.totalorder %s157, 63
      %s159 = scalar_select %p158, %s157, 63
      %s160 = smul.addr %s159, 8
      %s161 = scalar_lea.vmem %s3, %s160
      %s162 = smul.u32 32, %s14
      %p163 = scmp.lt.s32.totalorder %s162, 63
      %s164 = scalar_select %p163, %s162, 63
      %s165 = smul.addr %s164, 8
      %s166 = scalar_lea.vmem %s0, %s165
      %s167 = smul.u32 32, %s14
      %s168 = smul.u32 32, %s14
      %p169 = scmp.lt.s32.totalorder %s168, 63
      %s170 = scalar_select %p169, %s168, 63
      %s171 = smul.addr %s170, 8
      %s172 = scalar_lea.vmem %s3, %s171
      %s173 = smul.u32 32, %s14
      %v174 = vld [vmem:[%s166] sm:$0xff]
      %v175 = vld [vmem:[%s166 + $0x8] sm:$0xff]
      %v176 = vld [vmem:[%s166 + $0x10] sm:$0xff]
      %v177 = vld [vmem:[%s166 + $0x18] sm:$0xff]
      %v178 = vld [vmem:[%s166 + $0x20] sm:$0xff]
      %v179 = vld [vmem:[%s166 + $0x28] sm:$0xff]
      %v180 = vld [vmem:[%s166 + $0x30] sm:$0xff]
      %v181 = vld [vmem:[%s166 + $0x38] sm:$0xff]
      %v182 = vld [vmem:[%s166 + $0x40] sm:$0xff]
      %v183 = vld [vmem:[%s166 + $0x48] sm:$0xff]
      %v184 = vld [vmem:[%s166 + $0x50] sm:$0xff]
      %v185 = vld [vmem:[%s166 + $0x58] sm:$0xff]
      %v186 = vld [vmem:[%s166 + $0x60] sm:$0xff]
      %v187 = vld [vmem:[%s166 + $0x68] sm:$0xff]
      %v188 = vld [vmem:[%s166 + $0x70] sm:$0xff]
      %v189 = vld [vmem:[%s166 + $0x78] sm:$0xff]
      %v190 = vld [vmem:[%s166 + $0x80] sm:$0xff]
      %v191 = vld [vmem:[%s166 + $0x88] sm:$0xff]
      %v192 = vld [vmem:[%s166 + $0x90] sm:$0xff]
      %v193 = vld [vmem:[%s166 + $0x98] sm:$0xff]
      %v194 = vld [vmem:[%s166 + $0xa0] sm:$0xff]
      %v195 = vld [vmem:[%s166 + $0xa8] sm:$0xff]
      %v196 = vld [vmem:[%s166 + $0xb0] sm:$0xff]
      %v197 = vld [vmem:[%s166 + $0xb8] sm:$0xff]
      %v198 = vld [vmem:[%s166 + $0xc0] sm:$0xff]
      %v199 = vld [vmem:[%s166 + $0xc8] sm:$0xff]
      %v200 = vld [vmem:[%s166 + $0xd0] sm:$0xff]
      %v201 = vld [vmem:[%s166 + $0xd8] sm:$0xff]
      %v202 = vld [vmem:[%s166 + $0xe0] sm:$0xff]
      %v203 = vld [vmem:[%s166 + $0xe8] sm:$0xff]
      %v204 = vld [vmem:[%s166 + $0xf0] sm:$0xff]
      %v205 = vld [vmem:[%s166 + $0xf8] sm:$0xff]
      %v206 = vld [vmem:[%s1] sm:$0xff]
      %v207 = vld [vmem:[%s1 + $0x8] sm:$0xff]
      %v208 = vld [vmem:[%s1 + $0x10] sm:$0xff]
      %v209 = vld [vmem:[%s1 + $0x18] sm:$0xff]
      %v210 = vld [vmem:[%s1 + $0x20] sm:$0xff]
      %v211 = vld [vmem:[%s2] sm:$0x1]
      %v213 = vlaneseq
      %v214 = vshrl.u32 %v213, 7
      %v215 = vsub.s32 0, %v214
      %v216 = vrot.slane %v211, %v215
      %vm218 = vcmask 326656
      %v220 = vsel %vm218, %v174, 0
      %v223 = vsel %vm218, %v175, 0
      %v226 = vsel %vm218, %v176, 0
      %v229 = vsel %vm218, %v177, 0
      %v232 = vsel %vm218, %v178, 0
      %v235 = vsel %vm218, %v179, 0
      %v238 = vsel %vm218, %v180, 0
      %v241 = vsel %vm218, %v181, 0
      %v244 = vsel %vm218, %v182, 0
      %v247 = vsel %vm218, %v183, 0
      %v250 = vsel %vm218, %v184, 0
      %v253 = vsel %vm218, %v185, 0
      %v256 = vsel %vm218, %v186, 0
      %v259 = vsel %vm218, %v187, 0
      %v262 = vsel %vm218, %v188, 0
      %v265 = vsel %vm218, %v189, 0
      %v268 = vsel %vm218, %v190, 0
      %v271 = vsel %vm218, %v191, 0
      %v274 = vsel %vm218, %v192, 0
      %v277 = vsel %vm218, %v193, 0
      %v280 = vsel %vm218, %v194, 0
      %v283 = vsel %vm218, %v195, 0
      %v286 = vsel %vm218, %v196, 0
      %v289 = vsel %vm218, %v197, 0
      %v292 = vsel %vm218, %v198, 0
      %v295 = vsel %vm218, %v199, 0
      %v298 = vsel %vm218, %v200, 0
      %v301 = vsel %vm218, %v201, 0
      %v304 = vsel %vm218, %v202, 0
      %v307 = vsel %vm218, %v203, 0
      %v310 = vsel %vm218, %v204, 0
      %v313 = vsel %vm218, %v205, 0
      %315 = vmatprep.subr.mxu0 0.0
      %316 = vmatpush1.msra.mxu0 %v206
      %317 = vmatprep.subr.mxu0 0.0
      %318 = vmatpush1.msra.mxu0 %v207
      %319 = vmatprep.subr.mxu0 0.0
      %320 = vmatpush1.msra.mxu0 %v208
      %321 = vmatprep.subr.mxu0 0.0
      %322 = vmatpush1.msra.mxu0 %v209
      %323 = vmatprep.subr.mxu0 0.0
      %324 = vmatpush1.msra.mxu0 %v210
      %325 = vmatprep.subr.mxu0 0.0
      %326 = vmatpush1.msra.mxu0 0.0
      %327 = vmatprep.subr.mxu0 0.0
      %328 = vmatpush1.msra.mxu0 0.0
      %329 = vmatprep.subr.mxu0 0.0
      %330 = vmatpush1.msra.mxu0 0.0
      %331 = vmatprep.subr.mxu0 0.0
      %332 = vmatpush1.msra.mxu0 0.0
      %333 = vmatprep.subr.mxu0 0.0
      %334 = vmatpush1.msra.mxu0 0.0
      %335 = vmatprep.subr.mxu0 0.0
      %336 = vmatpush1.msra.mxu0 0.0
      %337 = vmatprep.subr.mxu0 0.0
      %338 = vmatpush1.msra.mxu0 0.0
      %339 = vmatprep.subr.mxu0 0.0
      %340 = vmatpush1.msra.mxu0 0.0
      %341 = vmatprep.subr.mxu0 0.0
      %342 = vmatpush1.msra.mxu0 0.0
      %343 = vmatprep.subr.mxu0 0.0
      %344 = vmatpush1.msra.mxu0 0.0
      %345 = vmatprep.subr.mxu0 0.0
      %346 = vmatpush1.msra.mxu0 0.0
      %347 = vmatprep.subr.mxu0 0.0
      %348 = vmatpush1.msra.mxu0 0.0
      %349 = vmatprep.subr.mxu0 0.0
      %350 = vmatpush1.msra.mxu0 0.0
      %351 = vmatprep.subr.mxu0 0.0
      %352 = vmatpush1.msra.mxu0 0.0
      %353 = vmatprep.subr.mxu0 0.0
      %354 = vmatpush1.msra.mxu0 0.0
      %355 = vmatprep.subr.mxu0 0.0
      %356 = vmatpush1.msra.mxu0 0.0
      %357 = vmatprep.subr.mxu0 0.0
      %358 = vmatpush1.msra.mxu0 0.0
      %359 = vmatprep.subr.mxu0 0.0
      %360 = vmatpush1.msra.mxu0 0.0
      %361 = vmatprep.subr.mxu0 0.0
      %362 = vmatpush1.msra.mxu0 0.0
      %363 = vmatprep.subr.mxu0 0.0
      %364 = vmatpush1.msra.mxu0 0.0
      %365 = vmatprep.subr.mxu0 0.0
      %366 = vmatpush1.msra.mxu0 0.0
      %367 = vmatprep.subr.mxu0 0.0
      %368 = vmatpush1.msra.mxu0 0.0
      %369 = vmatprep.subr.mxu0 0.0
      %370 = vmatpush1.msra.mxu0 0.0
      %371 = vmatprep.subr.mxu0 0.0
      %372 = vmatpush1.msra.mxu0 0.0
      %373 = vmatprep.subr.mxu0 0.0
      %374 = vmatpush1.msra.mxu0 0.0
      %375 = vmatprep.subr.mxu0 0.0
      %376 = vmatpush1.msra.mxu0 0.0
      %377 = vmatprep.subr.mxu0 0.0
      %378 = vmatpush1.msra.mxu0 0.0
      %379 = vmatprep.mubr.f32.mxu0 0.0
      %380 = vmatmul.mubr.f32.gmra.mrb[0].mxu0 %v220
      %v381 = vpop.f32.mrb[0].mxu0
      %v382 = vadd.f32 %v216, %v381
      %v383 = vpop.f32.mrb[0].mxu0
      %384 = vmatprep.mubr.f32.mxu0 0.0
      %385 = vmatmul.mubr.f32.gmra.mrb[0].mxu0 %v223
      %v386 = vpop.f32.mrb[0].mxu0
      %v387 = vadd.f32 %v216, %v386
      %v388 = vpop.f32.mrb[0].mxu0
      %389 = vmatprep.mubr.f32.mxu0 0.0
      %390 = vmatmul.mubr.f32.gmra.mrb[0].mxu0 %v226
      %v391 = vpop.f32.mrb[0].mxu0
      %v392 = vadd.f32 %v216, %v391
      %v393 = vpop.f32.mrb[0].mxu0
      %394 = vmatprep.mubr.f32.mxu0 0.0
      %395 = vmatmul.mubr.f32.gmra.mrb[0].mxu0 %v229
      %v396 = vpop.f32.mrb[0].mxu0
      %v397 = vadd.f32 %v216, %v396
      %v398 = vpop.f32.mrb[0].mxu0
      %399 = vmatprep.mubr.f32.mxu0 0.0
      %400 = vmatmul.mubr.f32.gmra.mrb[0].mxu0 %v232
      %v401 = vpop.f32.mrb[0].mxu0
      %v402 = vadd.f32 %v216, %v401
      %v403 = vpop.f32.mrb[0].mxu0
      %404 = vmatprep.mubr.f32.mxu0 0.0
      %405 = vmatmul.mubr.f32.gmra.mrb[0].mxu0 %v235
      %v406 = vpop.f32.mrb[0].mxu0
      %v407 = vadd.f32 %v216, %v406
      %v408 = vpop.f32.mrb[0].mxu0
      %409 = vmatprep.mubr.f32.mxu0 0.0
      %410 = vmatmul.mubr.f32.gmra.mrb[0].mxu0 %v238
      %v411 = vpop.f32.mrb[0].mxu0
      %v412 = vadd.f32 %v216, %v411
      %v413 = vpop.f32.mrb[0].mxu0
      %414 = vmatprep.mubr.f32.mxu0 0.0
      %415 = vmatmul.mubr.f32.gmra.mrb[0].mxu0 %v241
      %v416 = vpop.f32.mrb[0].mxu0
      %v417 = vadd.f32 %v216, %v416
      %v418 = vpop.f32.mrb[0].mxu0
      %419 = vmatprep.mubr.f32.mxu0 0.0
      %420 = vmatmul.mubr.f32.gmra.mrb[0].mxu0 %v244
      %v421 = vpop.f32.mrb[0].mxu0
      %v422 = vadd.f32 %v216, %v421
      %v423 = vpop.f32.mrb[0].mxu0
      %424 = vmatprep.mubr.f32.mxu0 0.0
      %425 = vmatmul.mubr.f32.gmra.mrb[0].mxu0 %v247
      %v426 = vpop.f32.mrb[0].mxu0
      %v427 = vadd.f32 %v216, %v426
      %v428 = vpop.f32.mrb[0].mxu0
      %429 = vmatprep.mubr.f32.mxu0 0.0
      %430 = vmatmul.mubr.f32.gmra.mrb[0].mxu0 %v250
      %v431 = vpop.f32.mrb[0].mxu0
      %v432 = vadd.f32 %v216, %v431
      %v433 = vpop.f32.mrb[0].mxu0
      %434 = vmatprep.mubr.f32.mxu0 0.0
      %435 = vmatmul.mubr.f32.gmra.mrb[0].mxu0 %v253
      %v436 = vpop.f32.mrb[0].mxu0
      %v437 = vadd.f32 %v216, %v436
      %v438 = vpop.f32.mrb[0].mxu0
      %439 = vmatprep.mubr.f32.mxu0 0.0
      %440 = vmatmul.mubr.f32.gmra.mrb[0].mxu0 %v256
      %v441 = vpop.f32.mrb[0].mxu0
      %v442 = vadd.f32 %v216, %v441
      %v443 = vpop.f32.mrb[0].mxu0
      %444 = vmatprep.mubr.f32.mxu0 0.0
      %445 = vmatmul.mubr.f32.gmra.mrb[0].mxu0 %v259
      %v446 = vpop.f32.mrb[0].mxu0
      %v447 = vadd.f32 %v216, %v446
      %v448 = vpop.f32.mrb[0].mxu0
      %449 = vmatprep.mubr.f32.mxu0 0.0
      %450 = vmatmul.mubr.f32.gmra.mrb[0].mxu0 %v262
      %v451 = vpop.f32.mrb[0].mxu0
      %v452 = vadd.f32 %v216, %v451
      %v453 = vpop.f32.mrb[0].mxu0
      %454 = vmatprep.mubr.f32.mxu0 0.0
      %455 = vmatmul.mubr.f32.gmra.mrb[0].mxu0 %v265
      %v456 = vpop.f32.mrb[0].mxu0
      %v457 = vadd.f32 %v216, %v456
      %v458 = vpop.f32.mrb[0].mxu0
      %459 = vmatprep.mubr.f32.mxu0 0.0
      %460 = vmatmul.mubr.f32.gmra.mrb[0].mxu0 %v268
      %v461 = vpop.f32.mrb[0].mxu0
      %v462 = vadd.f32 %v216, %v461
      %v463 = vpop.f32.mrb[0].mxu0
      %464 = vmatprep.mubr.f32.mxu0 0.0
      %465 = vmatmul.mubr.f32.gmra.mrb[0].mxu0 %v271
      %v466 = vpop.f32.mrb[0].mxu0
      %v467 = vadd.f32 %v216, %v466
      %v468 = vpop.f32.mrb[0].mxu0
      %469 = vmatprep.mubr.f32.mxu0 0.0
      %470 = vmatmul.mubr.f32.gmra.mrb[0].mxu0 %v274
      %v471 = vpop.f32.mrb[0].mxu0
      %v472 = vadd.f32 %v216, %v471
      %v473 = vpop.f32.mrb[0].mxu0
      %474 = vmatprep.mubr.f32.mxu0 0.0
      %475 = vmatmul.mubr.f32.gmra.mrb[0].mxu0 %v277
      %v476 = vpop.f32.mrb[0].mxu0
      %v477 = vadd.f32 %v216, %v476
      %v478 = vpop.f32.mrb[0].mxu0
      %479 = vmatprep.mubr.f32.mxu0 0.0
      %480 = vmatmul.mubr.f32.gmra.mrb[0].mxu0 %v280
      %v481 = vpop.f32.mrb[0].mxu0
      %v482 = vadd.f32 %v216, %v481
      %v483 = vpop.f32.mrb[0].mxu0
      %484 = vmatprep.mubr.f32.mxu0 0.0
      %485 = vmatmul.mubr.f32.gmra.mrb[0].mxu0 %v283
      %v486 = vpop.f32.mrb[0].mxu0
      %v487 = vadd.f32 %v216, %v486
      %v488 = vpop.f32.mrb[0].mxu0
      %489 = vmatprep.mubr.f32.mxu0 0.0
      %490 = vmatmul.mubr.f32.gmra.mrb[0].mxu0 %v286
      %v491 = vpop.f32.mrb[0].mxu0
      %v492 = vadd.f32 %v216, %v491
      %v493 = vpop.f32.mrb[0].mxu0
      %494 = vmatprep.mubr.f32.mxu0 0.0
      %495 = vmatmul.mubr.f32.gmra.mrb[0].mxu0 %v289
      %v496 = vpop.f32.mrb[0].mxu0
      %v497 = vadd.f32 %v216, %v496
      %v498 = vpop.f32.mrb[0].mxu0
      %499 = vmatprep.mubr.f32.mxu0 0.0
      %500 = vmatmul.mubr.f32.gmra.mrb[0].mxu0 %v292
      %v501 = vpop.f32.mrb[0].mxu0
      %v502 = vadd.f32 %v216, %v501
      %v503 = vpop.f32.mrb[0].mxu0
      %504 = vmatprep.mubr.f32.mxu0 0.0
      %505 = vmatmul.mubr.f32.gmra.mrb[0].mxu0 %v295
      %v506 = vpop.f32.mrb[0].mxu0
      %v507 = vadd.f32 %v216, %v506
      %v508 = vpop.f32.mrb[0].mxu0
      %509 = vmatprep.mubr.f32.mxu0 0.0
      %510 = vmatmul.mubr.f32.gmra.mrb[0].mxu0 %v298
      %v511 = vpop.f32.mrb[0].mxu0
      %v512 = vadd.f32 %v216, %v511
      %v513 = vpop.f32.mrb[0].mxu0
      %514 = vmatprep.mubr.f32.mxu0 0.0
      %515 = vmatmul.mubr.f32.gmra.mrb[0].mxu0 %v301
      %v516 = vpop.f32.mrb[0].mxu0
      %v517 = vadd.f32 %v216, %v516
      %v518 = vpop.f32.mrb[0].mxu0
      %519 = vmatprep.mubr.f32.mxu0 0.0
      %520 = vmatmul.mubr.f32.gmra.mrb[0].mxu0 %v304
      %v521 = vpop.f32.mrb[0].mxu0
      %v522 = vadd.f32 %v216, %v521
      %v523 = vpop.f32.mrb[0].mxu0
      %524 = vmatprep.mubr.f32.mxu0 0.0
      %525 = vmatmul.mubr.f32.gmra.mrb[0].mxu0 %v307
      %v526 = vpop.f32.mrb[0].mxu0
      %v527 = vadd.f32 %v216, %v526
      %v528 = vpop.f32.mrb[0].mxu0
      %529 = vmatprep.mubr.f32.mxu0 0.0
      %530 = vmatmul.mubr.f32.gmra.mrb[0].mxu0 %v310
      %v531 = vpop.f32.mrb[0].mxu0
      %v532 = vadd.f32 %v216, %v531
      %v533 = vpop.f32.mrb[0].mxu0
      %534 = vmatprep.mubr.f32.mxu0 0.0
      %535 = vmatmul.mubr.f32.gmra.mrb[0].mxu0 %v313
      %v536 = vpop.f32.mrb[0].mxu0
      %v537 = vadd.f32 %v216, %v536
      %v538 = vpop.f32.mrb[0].mxu0
      %539 = vdwg.mxu0
      %v540 = vmax.f32 %v382, 0.0
      %v541 = vmax.f32 %v387, 0.0
      %v542 = vmax.f32 %v392, 0.0
      %v543 = vmax.f32 %v397, 0.0
      %v544 = vmax.f32 %v402, 0.0
      %v545 = vmax.f32 %v407, 0.0
      %v546 = vmax.f32 %v412, 0.0
      %v547 = vmax.f32 %v417, 0.0
      %v548 = vmax.f32 %v422, 0.0
      %v549 = vmax.f32 %v427, 0.0
      %v550 = vmax.f32 %v432, 0.0
      %v551 = vmax.f32 %v437, 0.0
      %v552 = vmax.f32 %v442, 0.0
      %v553 = vmax.f32 %v447, 0.0
      %v554 = vmax.f32 %v452, 0.0
      %v555 = vmax.f32 %v457, 0.0
      %v556 = vmax.f32 %v462, 0.0
      %v557 = vmax.f32 %v467, 0.0
      %v558 = vmax.f32 %v472, 0.0
      %v559 = vmax.f32 %v477, 0.0
      %v560 = vmax.f32 %v482, 0.0
      %v561 = vmax.f32 %v487, 0.0
      %v562 = vmax.f32 %v492, 0.0
      %v563 = vmax.f32 %v497, 0.0
      %v564 = vmax.f32 %v502, 0.0
      %v565 = vmax.f32 %v507, 0.0
      %v566 = vmax.f32 %v512, 0.0
      %v567 = vmax.f32 %v517, 0.0
      %v568 = vmax.f32 %v522, 0.0
      %v569 = vmax.f32 %v527, 0.0
      %v570 = vmax.f32 %v532, 0.0
      %v571 = vmax.f32 %v537, 0.0
      %vm572 = vcmask 523264
      %573 = vst.msk [vmem:[%s172] sm:$0xff] %vm572, %v540
      %574 = vst.msk [vmem:[%s172 + $0x8] sm:$0xff] %vm572, %v541
      %575 = vst.msk [vmem:[%s172 + $0x10] sm:$0xff] %vm572, %v542
      %576 = vst.msk [vmem:[%s172 + $0x18] sm:$0xff] %vm572, %v543
      %577 = vst.msk [vmem:[%s172 + $0x20] sm:$0xff] %vm572, %v544
      %578 = vst.msk [vmem:[%s172 + $0x28] sm:$0xff] %vm572, %v545
      %579 = vst.msk [vmem:[%s172 + $0x30] sm:$0xff] %vm572, %v546
      %580 = vst.msk [vmem:[%s172 + $0x38] sm:$0xff] %vm572, %v547
      %581 = vst.msk [vmem:[%s172 + $0x40] sm:$0xff] %vm572, %v548
      %582 = vst.msk [vmem:[%s172 + $0x48] sm:$0xff] %vm572, %v549
      %583 = vst.msk [vmem:[%s172 + $0x50] sm:$0xff] %vm572, %v550
      %584 = vst.msk [vmem:[%s172 + $0x58] sm:$0xff] %vm572, %v551
      %585 = vst.msk [vmem:[%s172 + $0x60] sm:$0xff] %vm572, %v552
      %586 = vst.msk [vmem:[%s172 + $0x68] sm:$0xff] %vm572, %v553
      %587 = vst.msk [vmem:[%s172 + $0x70] sm:$0xff] %vm572, %v554
      %588 = vst.msk [vmem:[%s172 + $0x78] sm:$0xff] %vm572, %v555
      %589 = vst.msk [vmem:[%s172 + $0x80] sm:$0xff] %vm572, %v556
      %590 = vst.msk [vmem:[%s172 + $0x88] sm:$0xff] %vm572, %v557
      %591 = vst.msk [vmem:[%s172 + $0x90] sm:$0xff] %vm572, %v558
      %592 = vst.msk [vmem:[%s172 + $0x98] sm:$0xff] %vm572, %v559
      %593 = vst.msk [vmem:[%s172 + $0xa0] sm:$0xff] %vm572, %v560
      %594 = vst.msk [vmem:[%s172 + $0xa8] sm:$0xff] %vm572, %v561
      %595 = vst.msk [vmem:[%s172 + $0xb0] sm:$0xff] %vm572, %v562
      %596 = vst.msk [vmem:[%s172 + $0xb8] sm:$0xff] %vm572, %v563
      %597 = vst.msk [vmem:[%s172 + $0xc0] sm:$0xff] %vm572, %v564
      %598 = vst.msk [vmem:[%s172 + $0xc8] sm:$0xff] %vm572, %v565
      %599 = vst.msk [vmem:[%s172 + $0xd0] sm:$0xff] %vm572, %v566
      %600 = vst.msk [vmem:[%s172 + $0xd8] sm:$0xff] %vm572, %v567
      %601 = vst.msk [vmem:[%s172 + $0xe0] sm:$0xff] %vm572, %v568
      %602 = vst.msk [vmem:[%s172 + $0xe8] sm:$0xff] %vm572, %v569
      %603 = vst.msk [vmem:[%s172 + $0xf0] sm:$0xff] %vm572, %v570
      %604 = vst.msk [vmem:[%s172 + $0xf8] sm:$0xff] %vm572, %v571
      %s605 = smul.u32 32, %s14
      %p606 = scmp.lt.s32.totalorder %s605, 63
      %s607 = scalar_select %p606, %s605, 63
      %s608 = smul.addr %s607, 8
      %s609 = scalar_lea.vmem %s3, %s608
      // Predicated region
      $region33: #{encoder_layers_forward.2} parent=31 // pred_check
        %p610 = pneg %p100
      $region34: #{encoder_layers_forward.2} parent=31 // pred_check_branch
        %612 = sbr.rel (%p610) target = $region36
      $region35: #{encoder_layers_forward.2} parent=31 // pred_region
        %s613 = smul.u32 32, %s14
      $region36: #{encoder_layers_forward.2} parent=31 // pred_fallthru
        _
    $region32: #{encoder_layers_forward.2} parent=5 // pred_fallthru
      _
    %p614 = scmp.le.s32.totalorder 2, %s9
    // Predicated region
    $region37: #{encoder_layers_forward.2} parent=5 // pred_check
      %p615 = pneg %p614
    $region38: #{encoder_layers_forward.2} parent=5 // pred_check_branch
      %617 = sbr.rel (%p615) target = $region40
    $region39: #{encoder_layers_forward.2} parent=5 // pred_region
      %s618 = ssub.s32 %s9, 2
      // Predicated region
      $region41: #{encoder_layers_forward.2} parent=39 // pred_check
        %p619 = pneg %p106
      $region42: #{encoder_layers_forward.2} parent=39 // pred_check_branch
        %621 = sbr.rel (%p619) target = $region44
      $region43: #{encoder_layers_forward.2} parent=39 // pred_region
        %s622 = smul.u32 32, %s15
        %p623 = scmp.lt.s32.totalorder %s622, 63
        %s624 = scalar_select %p623, %s622, 63
        %s625 = smul.addr %s624, 8
        %s626 = scalar_lea.vmem %s3, %s625
      $region44: #{encoder_layers_forward.2} parent=39 // pred_fallthru
        _
    $region40: #{encoder_layers_forward.2} parent=5 // pred_fallthru
      _
  $region6: #{encoder_layers_forward.2} parent=0 // loop_footer
    %s13 = sadd.s32 1, %s9
  $region7: #{encoder_layers_forward.2} parent=0 // loop_footer_branch
    %8 = sbr.rel target = $region3
  $region8: #{encoder_layers_forward.2} parent=0 // loop_exit
    _

// kernel: encoder_layers_forward.3
$region0: #{encoder_layers_forward.3}
  #allocation0 [shape = 'u32[]', space=smem, size = 0x4, offset = 0x4, fixed_abs, tag = 'smem constant byte address 0x4 - core index']
  #allocation1 [shape = 'u32[144,128]{1,0:T(1,128)}', space=vmem, size = 0x12000, scoped, tag = 'internal scratch']
  %s0 = inlined_call_operand.vmem [shape: f32[512,576], index: 0, kind: input, shape index: {}]
  %s1 = inlined_call_operand.vmem [shape: f32[576,64], index: 1, kind: input, shape index: {}]
  %s2 = inlined_call_operand.vmem [shape: f32[1,64], index: 2, kind: input, shape index: {}]
  %s3 = inlined_call_operand.hbm [shape: f32[512,64], index: 3, kind: output, shape index: {}]
  %s4 = sld [smem:[#allocation0]]
  $region45: #{encoder_layers_forward.3} parent=0
    _
  %s6 = ssub.s32 1, %s4
  %s7 = scalar_select 0, %s6, %s4
  $region1: #{encoder_layers_forward.3} parent=0
    #allocation2 [shape = 'u8[262144]{0}', space=vmem, size = 0x40000, scoped, tag = 'output window, operand 0']
    #allocation3 [shape = 's32[2]{0}', space=sflag, size = 0x8, scoped, tag = 'scoped memory for encoder_layers_forward.3']
    %8 = vsyncpa [#allocation3], 0
    %s9 = scalar_lea.sflag [#allocation3], 1
    %10 = vsyncpa %s9, 0
    loop: start=0, step=1, limit=4
    $region2: #{encoder_layers_forward.3} parent=1 // loop_pre_header
      _
    $region3: #{encoder_layers_forward.3} parent=1 // loop_header
      %s12 = sphi 0, %s16
      %p13 = scmp.ge.s32.totalorder %s12, 4
      %s22 = sphi 0, %s24
      %s25 = sphi 0, %s22
      %s26 = sphi 0, %s25
      %s42 = sphi 0, %s26
      %s46 = sphi 0, %s46
      %s48 = sphi 0, %s46
      %s49 = sphi 0, %s48
      %s63 = sphi 0, %s49
      %s67 = sphi 0, %s67
      %s69 = sphi 0, %s67
      %s70 = sphi 0, %s69
      %s84 = sphi 0, %s70
      %s90 = sphi 0, %s92
      %s93 = sphi 0, %s90
      %s94 = sphi 0, %s93
      %s110 = sphi 0, %s94
    $region4: #{encoder_layers_forward.3} parent=1 // loop_header_branch
      %15 = sbr.rel (%p13) target = $region8
    $region5: #{encoder_layers_forward.3} parent=1 // loop_body
      %s17 = ssub.s32 %s12, 1
      %s18 = ssub.s32 %s12, 2
      %s19 = sadd.s32 %s12, 1
      %s20 = ssub.s32 %s12, %s19
      %p21 = scmp.eq.s32.totalorder %s20, 0
      %s23 = sadd.s32 %s22, 1
      %s24 = scalar_select %p21, %s22, %s23
      %p27 = pneg %p21
      %p28 = scmp.eq.s32.totalorder %s12, 1
      %p29 = por %p27, %p28
      %p30 = scmp.ne.s32.totalorder %s22, %s25
      %p31 = scmp.eq.s32.totalorder %s12, 0
      %p32 = por %p30, %p31
      %p33 = scmp.ne.s32.totalorder %s22, %s25
      %p34 = scmp.eq.s32.totalorder %s17, 1
      %p35 = por %p33, %p34
      %p36 = scmp.ne.s32.totalorder %s25, %s26
      %p37 = scmp.eq.s32.totalorder %s17, 0
      %p38 = por %p36, %p37
      %p39 = scmp.ne.s32.totalorder %s25, %s26
      %p40 = scmp.eq.s32.totalorder %s18, 1
      %p41 = por %p39, %p40
      %p43 = scmp.ne.s32.totalorder %s26, %s42
      %p44 = scmp.eq.s32.totalorder %s18, 0
      %p45 = por %p43, %p44
      %s47 = sadd.s32 %s46, 1
      %p50 = scmp.eq.s32.totalorder %s12, 1
      %p51 = scmp.ne.s32.totalorder %s46, %s48
      %p52 = scmp.eq.s32.totalorder %s12, 0
      %p53 = por %p51, %p52
      %p54 = scmp.ne.s32.totalorder %s46, %s48
      %p55 = scmp.eq.s32.totalorder %s17, 1
      %p56 = por %p54, %p55
      %p57 = scmp.ne.s32.totalorder %s48, %s49
      %p58 = scmp.eq.s32.totalorder %s17, 0
      %p59 = por %p57, %p58
      %p60 = scmp.ne.s32.totalorder %s48, %s49
      %p61 = scmp.eq.s32.totalorder %s18, 1
      %p62 = por %p60, %p61
      %p64 = scmp.ne.s32.totalorder %s49, %s63
      %p65 = scmp.eq.s32.totalorder %s18, 0
      %p66 = por %p64, %p65
      %s68 = sadd.s32 %s67, 1
      %p71 = scmp.eq.s32.totalorder %s12, 1
      %p72 = scmp.ne.s32.totalorder %s67, %s69
      %p73 = scmp.eq.s32.totalorder %s12, 0
      %p74 = por %p72, %p73
      %p75 = scmp.ne.s32.totalorder %s67, %s69
      %p76 = scmp.eq.s32.totalorder %s17, 1
      %p77 = por %p75, %p76
      %p78 = scmp.ne.s32.totalorder %s69, %s70
      %p79 = scmp.eq.s32.totalorder %s17, 0
      %p80 = por %p78, %p79
      %p81 = scmp.ne.s32.totalorder %s69, %s70
      %p82 = scmp.eq.s32.totalorder %s18, 1
      %p83 = por %p81, %p82
      %p85 = scmp.ne.s32.totalorder %s70, %s84
      %p86 = scmp.eq.s32.totalorder %s18, 0
      %p87 = por %p85, %p86
      %s88 = ssub.s32 %s12, %s19
      %p89 = scmp.eq.s32.totalorder %s88, 0
      %s91 = sadd.s32 %s90, 1
      %s92 = scalar_select %p89, %s90, %s91
      %p95 = pneg %p89
      %p96 = scmp.eq.s32.totalorder %s12, 1
      %p97 = por %p95, %p96
      %p98 = scmp.ne.s32.totalorder %s90, %s93
      %p99 = scmp.eq.s32.totalorder %s12, 0
      %p100 = por %p98, %p99
      %p101 = scmp.ne.s32.totalorder %s90, %s93
      %p102 = scmp.eq.s32.totalorder %s17, 1
      %p103 = por %p101, %p102
      %p104 = scmp.ne.s32.totalorder %s93, %s94
      %p105 = scmp.eq.s32.totalorder %s17, 0
      %p106 = por %p104, %p105
      %p107 = scmp.ne.s32.totalorder %s93, %s94
      %p108 = scmp.eq.s32.totalorder %s18, 1
      %p109 = por %p107, %p108
      %p111 = scmp.ne.s32.totalorder %s94, %s110
      %p112 = scmp.eq.s32.totalorder %s18, 0
      %p113 = por %p111, %p112
      %p114 = scmp.le.s32.totalorder 1, %s12
      %p115 = scmp.lt.s32.totalorder %s12, 3
      %p116 = pnand %p114, %p115
      %p117 = pneg %p116
      // Predicated region
      $region9: #{encoder_layers_forward.3} parent=5 // pred_check
        _
      $region10: #{encoder_layers_forward.3} parent=5 // pred_check_branch
        %119 = sbr.rel (%p116) target = $region12
      $region11: #{encoder_layers_forward.3} parent=5 // pred_region
        %s120 = ssub.s32 %s12, 1
        // Predicated region
        $region13: #{encoder_layers_forward.3} parent=11 // pred_check
          %p121 = pneg %p59
        $region14: #{encoder_layers_forward.3} parent=11 // pred_check_branch
          %123 = sbr.rel (%p121) target = $region16
        $region15: #{encoder_layers_forward.3} parent=11 // pred_region
          _
        $region16: #{encoder_layers_forward.3} parent=11 // pred_fallthru
          _
        // Predicated region
        $region17: #{encoder_layers_forward.3} parent=11 // pred_check
          %p124 = pneg %p80
        $region18: #{encoder_layers_forward.3} parent=11 // pred_check_branch
          %126 = sbr.rel (%p124) target = $region20
        $region19: #{encoder_layers_forward.3} parent=11 // pred_region
          _
        $region20: #{encoder_layers_forward.3} parent=11 // pred_fallthru
          _
      $region12: #{encoder_layers_forward.3} parent=5 // pred_fallthru
        _
      %p127 = scmp.lt.s32.totalorder %s12, 2
      // Predicated region
      $region21: #{encoder_layers_forward.3} parent=5 // pred_check
        %p128 = pneg %p127
      $region22: #{encoder_layers_forward.3} parent=5 // pred_check_branch
        %130 = sbr.rel (%p128) target = $region24
      $region23: #{encoder_layers_forward.3} parent=5 // pred_region
        // Predicated region
        $region25: #{encoder_layers_forward.3} parent=23 // pred_check
          %p131 = pneg %p32
        $region26: #{encoder_layers_forward.3} parent=23 // pred_check_branch
          %133 = sbr.rel (%p131) target = $region28
        $region27: #{encoder_layers_forward.3} parent=23 // pred_region
          %s134 = smul.u32 32, %s12
          %p135 = scmp.lt.s32.totalorder %s134, 63
          %s136 = scalar_select %p135, %s134, 63
          %s137 = smul.addr %s136, 5
          %s138 = smul.addr %s137, 8
          %s139 = scalar_lea.vmem %s0, %s138
          %s140 = smul.u32 32, %s12
        $region28: #{encoder_layers_forward.3} parent=23 // pred_fallthru
          _
      $region24: #{encoder_layers_forward.3} parent=5 // pred_fallthru
        _
      %p141 = scmp.le.s32.totalorder 1, %s12
      %p142 = scmp.lt.s32.totalorder %s12, 3
      %p143 = pnand %p141, %p142
      %p144 = pneg %p143
      // Predicated region
      $region29: #{encoder_layers_forward.3} parent=5 // pred_check
        _
      $region30: #{encoder_layers_forward.3} parent=5 // pred_check_branch
        %146 = sbr.rel (%p143) target = $region32
      $region31: #{encoder_layers_forward.3} parent=5 // pred_region
        %s147 = ssub.s32 %s12, 1
        %s148 = smul.u32 32, %s17
        %p149 = scmp.lt.s32.totalorder %s148, 63
        %s150 = scalar_select %p149, %s148, 63
        %s151 = smul.addr %s150, 5
        %s152 = smul.addr %s151, 8
        %s153 = scalar_lea.vmem %s0, %s152
        %p154 = pneg %p38
        %p155 = pneg %p35
        %p156 = pneg %p59
        %p157 = pneg %p56
        %p158 = pneg %p80
        %p159 = pneg %p77
        %p160 = pneg %p106
        %p161 = pneg %p103
        %s162 = sand.u32 %s93, 1
        %s163 = scalar_lea.sflag [#allocation3], %s162
        %s164 = sand.u32 %s93, 1
        %s165 = smul.addr %s164, 256
        %s166 = scalar_lea.vmem [#allocation2], %s165
        %s167 = smul.u32 32, %s17
        %p168 = scmp.lt.s32.totalorder %s167, 63
        %s169 = scalar_select %p168, %s167, 63
        %s170 = smul.addr %s169, 5
        %s171 = smul.addr %s170, 8
        %s172 = scalar_lea.vmem %s0, %s171
        %s173 = smul.u32 32, %s17
        %s174 = smul.u32 32, %s17
        %v175 = vld [vmem:[%s172] sm:$0xff]
        %v176 = vld [vmem:[%s172 + $0x8] sm:$0xff]
        %v177 = vld [vmem:[%s172 + $0x10] sm:$0xff]
        %v178 = vld [vmem:[%s172 + $0x18] sm:$0xff]
        %v179 = vld [vmem:[%s172 + $0x20] sm:$0xff]
        %v180 = vld [vmem:[%s172 + $0x28] sm:$0xff]
        %v181 = vld [vmem:[%s172 + $0x30] sm:$0xff]
        %v182 = vld [vmem:[%s172 + $0x38] sm:$0xff]
        %v183 = vld [vmem:[%s172 + $0x40] sm:$0xff]
        %v184 = vld [vmem:[%s172 + $0x48] sm:$0xff]
        %v185 = vld [vmem:[%s172 + $0x50] sm:$0xff]
        %v186 = vld [vmem:[%s172 + $0x58] sm:$0xff]
        %v187 = vld [vmem:[%s172 + $0x60] sm:$0xff]
        %v188 = vld [vmem:[%s172 + $0x68] sm:$0xff]
        %v189 = vld [vmem:[%s172 + $0x70] sm:$0xff]
        %v190 = vld [vmem:[%s172 + $0x78] sm:$0xff]
        %v191 = vld [vmem:[%s172 + $0x80] sm:$0xff]
        %v192 = vld [vmem:[%s172 + $0x88] sm:$0xff]
        %v193 = vld [vmem:[%s172 + $0x90] sm:$0xff]
        %v194 = vld [vmem:[%s172 + $0x98] sm:$0xff]
        %v195 = vld [vmem:[%s172 + $0xa0] sm:$0xff]
        %v196 = vld [vmem:[%s172 + $0xa8] sm:$0xff]
        %v197 = vld [vmem:[%s172 + $0xb0] sm:$0xff]
        %v198 = vld [vmem:[%s172 + $0xb8] sm:$0xff]
        %v199 = vld [vmem:[%s172 + $0xc0] sm:$0xff]
        %v200 = vld [vmem:[%s172 + $0xc8] sm:$0xff]
        %v201 = vld [vmem:[%s172 + $0xd0] sm:$0xff]
        %v202 = vld [vmem:[%s172 + $0xd8] sm:$0xff]
        %v203 = vld [vmem:[%s172 + $0xe0] sm:$0xff]
        %v204 = vld [vmem:[%s172 + $0xe8] sm:$0xff]
        %v205 = vld [vmem:[%s172 + $0xf0] sm:$0xff]
        %v206 = vld [vmem:[%s172 + $0xf8] sm:$0xff]
        %v207 = vld [vmem:[%s172 + $0x100] sm:$0xff]
        %v208 = vld [vmem:[%s172 + $0x108] sm:$0xff]
        %v209 = vld [vmem:[%s172 + $0x110] sm:$0xff]
        %v210 = vld [vmem:[%s172 + $0x118] sm:$0xff]
        %v211 = vld [vmem:[%s172 + $0x120] sm:$0xff]
        %v212 = vld [vmem:[%s172 + $0x128] sm:$0xff]
        %v213 = vld [vmem:[%s172 + $0x130] sm:$0xff]
        %v214 = vld [vmem:[%s172 + $0x138] sm:$0xff]
        %v215 = vld [vmem:[%s172 + $0x140] sm:$0xff]
        %v216 = vld [vmem:[%s172 + $0x148] sm:$0xff]
        %v217 = vld [vmem:[%s172 + $0x150] sm:$0xff]
        %v218 = vld [vmem:[%s172 + $0x158] sm:$0xff]
        %v219 = vld [vmem:[%s172 + $0x160] sm:$0xff]
        %v220 = vld [vmem:[%s172 + $0x168] sm:$0xff]
        %v221 = vld [vmem:[%s172 + $0x170] sm:$0xff]
        %v222 = vld [vmem:[%s172 + $0x178] sm:$0xff]
        %v223 = vld [vmem:[%s172 + $0x180] sm:$0xff]
        %v224 = vld [vmem:[%s172 + $0x188] sm:$0xff]
        %v225 = vld [vmem:[%s172 + $0x190] sm:$0xff]
        %v226 = vld [vmem:[%s172 + $0x198] sm:$0xff]
        %v227 = vld [vmem:[%s172 + $0x1a0] sm:$0xff]
        %v228 = vld [vmem:[%s172 + $0x1a8] sm:$0xff]
        %v229 = vld [vmem:[%s172 + $0x1b0] sm:$0xff]
        %v230 = vld [vmem:[%s172 + $0x1b8] sm:$0xff]
        %v231 = vld [vmem:[%s172 + $0x1c0] sm:$0xff]
        %v232 = vld [vmem:[%s172 + $0x1c8] sm:$0xff]
        %v233 = vld [vmem:[%s172 + $0x1d0] sm:$0xff]
        %v234 = vld [vmem:[%s172 + $0x1d8] sm:$0xff]
        %v235 = vld [vmem:[%s172 + $0x1e0] sm:$0xff]
        %v236 = vld [vmem:[%s172 + $0x1e8] sm:$0xff]
        %v237 = vld [vmem:[%s172 + $0x1f0] sm:$0xff]
        %v238 = vld [vmem:[%s172 + $0x1f8] sm:$0xff]
        %v239 = vld [vmem:[%s172 + $0x200] sm:$0xff]
        %v240 = vld [vmem:[%s172 + $0x208] sm:$0xff]
        %v241 = vld [vmem:[%s172 + $0x210] sm:$0xff]
        %v242 = vld [vmem:[%s172 + $0x218] sm:$0xff]
        %v243 = vld [vmem:[%s172 + $0x220] sm:$0xff]
        %v244 = vld [vmem:[%s172 + $0x228] sm:$0xff]
        %v245 = vld [vmem:[%s172 + $0x230] sm:$0xff]
        %v246 = vld [vmem:[%s172 + $0x238] sm:$0xff]
        %v247 = vld [vmem:[%s172 + $0x240] sm:$0xff]
        %v248 = vld [vmem:[%s172 + $0x248] sm:$0xff]
        %v249 = vld [vmem:[%s172 + $0x250] sm:$0xff]
        %v250 = vld [vmem:[%s172 + $0x258] sm:$0xff]
        %v251 = vld [vmem:[%s172 + $0x260] sm:$0xff]
        %v252 = vld [vmem:[%s172 + $0x268] sm:$0xff]
        %v253 = vld [vmem:[%s172 + $0x270] sm:$0xff]
        %v254 = vld [vmem:[%s172 + $0x278] sm:$0xff]
        %v255 = vld [vmem:[%s172 + $0x280] sm:$0xff]
        %v256 = vld [vmem:[%s172 + $0x288] sm:$0xff]
        %v257 = vld [vmem:[%s172 + $0x290] sm:$0xff]
        %v258 = vld [vmem:[%s172 + $0x298] sm:$0xff]
        %v259 = vld [vmem:[%s172 + $0x2a0] sm:$0xff]
        %v260 = vld [vmem:[%s172 + $0x2a8] sm:$0xff]
        %v261 = vld [vmem:[%s172 + $0x2b0] sm:$0xff]
        %v262 = vld [vmem:[%s172 + $0x2b8] sm:$0xff]
        %v263 = vld [vmem:[%s172 + $0x2c0] sm:$0xff]
        %v264 = vld [vmem:[%s172 + $0x2c8] sm:$0xff]
        %v265 = vld [vmem:[%s172 + $0x2d0] sm:$0xff]
        %v266 = vld [vmem:[%s172 + $0x2d8] sm:$0xff]
        %v267 = vld [vmem:[%s172 + $0x2e0] sm:$0xff]
        %v268 = vld [vmem:[%s172 + $0x2e8] sm:$0xff]
        %v269 = vld [vmem:[%s172 + $0x2f0] sm:$0xff]
        %v270 = vld [vmem:[%s172 + $0x2f8] sm:$0xff]
        %v271 = vld [vmem:[%s172 + $0x300] sm:$0xff]
        %v272 = vld [vmem:[%s172 + $0x308] sm:$0xff]
        %v273 = vld [vmem:[%s172 + $0x310] sm:$0xff]
        %v274 = vld [vmem:[%s172 + $0x318] sm:$0xff]
        %v275 = vld [vmem:[%s172 + $0x320] sm:$0xff]
        %v276 = vld [vmem:[%s172 + $0x328] sm:$0xff]
        %v277 = vld [vmem:[%s172 + $0x330] sm:$0xff]
        %v278 = vld [vmem:[%s172 + $0x338] sm:$0xff]
        %v279 = vld [vmem:[%s172 + $0x340] sm:$0xff]
        %v280 = vld [vmem:[%s172 + $0x348] sm:$0xff]
        %v281 = vld [vmem:[%s172 + $0x350] sm:$0xff]
        %v282 = vld [vmem:[%s172 + $0x358] sm:$0xff]
        %v283 = vld [vmem:[%s172 + $0x360] sm:$0xff]
        %v284 = vld [vmem:[%s172 + $0x368] sm:$0xff]
        %v285 = vld [vmem:[%s172 + $0x370] sm:$0xff]
        %v286 = vld [vmem:[%s172 + $0x378] sm:$0xff]
        %v287 = vld [vmem:[%s172 + $0x380] sm:$0xff]
        %v288 = vld [vmem:[%s172 + $0x388] sm:$0xff]
        %v289 = vld [vmem:[%s172 + $0x390] sm:$0xff]
        %v290 = vld [vmem:[%s172 + $0x398] sm:$0xff]
        %v291 = vld [vmem:[%s172 + $0x3a0] sm:$0xff]
        %v292 = vld [vmem:[%s172 + $0x3a8] sm:$0xff]
        %v293 = vld [vmem:[%s172 + $0x3b0] sm:$0xff]
        %v294 = vld [vmem:[%s172 + $0x3b8] sm:$0xff]
        %v295 = vld [vmem:[%s172 + $0x3c0] sm:$0xff]
        %v296 = vld [vmem:[%s172 + $0x3c8] sm:$0xff]
        %v297 = vld [vmem:[%s172 + $0x3d0] sm:$0xff]
        %v298 = vld [vmem:[%s172 + $0x3d8] sm:$0xff]
        %v299 = vld [vmem:[%s172 + $0x3e0] sm:$0xff]
        %v300 = vld [vmem:[%s172 + $0x3e8] sm:$0xff]
        %v301 = vld [vmem:[%s172 + $0x3f0] sm:$0xff]
        %v302 = vld [vmem:[%s172 + $0x3f8] sm:$0xff]
        %v303 = vld [vmem:[%s172 + $0x400] sm:$0xff]
        %v304 = vld [vmem:[%s172 + $0x408] sm:$0xff]
        %v305 = vld [vmem:[%s172 + $0x410] sm:$0xff]
        %v306 = vld [vmem:[%s172 + $0x418] sm:$0xff]
        %v307 = vld [vmem:[%s172 + $0x420] sm:$0xff]
        %v308 = vld [vmem:[%s172 + $0x428] sm:$0xff]
        %v309 = vld [vmem:[%s172 + $0x430] sm:$0xff]
        %v310 = vld [vmem:[%s172 + $0x438] sm:$0xff]
        %v311 = vld [vmem:[%s172 + $0x440] sm:$0xff]
        %v312 = vld [vmem:[%s172 + $0x448] sm:$0xff]
        %v313 = vld [vmem:[%s172 + $0x450] sm:$0xff]
        %v314 = vld [vmem:[%s172 + $0x458] sm:$0xff]
        %v315 = vld [vmem:[%s172 + $0x460] sm:$0xff]
        %v316 = vld [vmem:[%s172 + $0x468] sm:$0xff]
        %v317 = vld [vmem:[%s172 + $0x470] sm:$0xff]
        %v318 = vld [vmem:[%s172 + $0x478] sm:$0xff]
        %v319 = vld [vmem:[%s172 + $0x480] sm:$0xff]
        %v320 = vld [vmem:[%s172 + $0x488] sm:$0xff]
        %v321 = vld [vmem:[%s172 + $0x490] sm:$0xff]
        %v322 = vld [vmem:[%s172 + $0x498] sm:$0xff]
        %v323 = vld [vmem:[%s172 + $0x4a0] sm:$0xff]
        %v324 = vld [vmem:[%s172 + $0x4a8] sm:$0xff]
        %v325 = vld [vmem:[%s172 + $0x4b0] sm:$0xff]
        %v326 = vld [vmem:[%s172 + $0x4b8] sm:$0xff]
        %v327 = vld [vmem:[%s172 + $0x4c0] sm:$0xff]
        %v328 = vld [vmem:[%s172 + $0x4c8] sm:$0xff]
        %v329 = vld [vmem:[%s172 + $0x4d0] sm:$0xff]
        %v330 = vld [vmem:[%s172 + $0x4d8] sm:$0xff]
        %v331 = vld [vmem:[%s172 + $0x4e0] sm:$0xff]
        %v332 = vld [vmem:[%s172 + $0x4e8] sm:$0xff]
        %v333 = vld [vmem:[%s172 + $0x4f0] sm:$0xff]
        %v334 = vld [vmem:[%s172 + $0x4f8] sm:$0xff]
        %v335 = vld [vmem:[%s1] sm:$0xff]
        %v336 = vld [vmem:[%s1 + $0x8] sm:$0xff]
        %v337 = vld [vmem:[%s1 + $0x10] sm:$0xff]
        %v338 = vld [vmem:[%s1 + $0x18] sm:$0xff]
        %v339 = vld [vmem:[%s1 + $0x20] sm:$0xff]
        %v340 = vld [vmem:[%s1 + $0x28] sm:$0xff]
        %v341 = vld [vmem:[%s1 + $0x30] sm:$0xff]
        %v342 = vld [vmem:[%s1 + $0x38] sm:$0xff]
        %v343 = vld [vmem:[%s1 + $0x40] sm:$0xff]
        %v344 = vld [vmem:[%s1 + $0x48] sm:$0xff]
        %v345 = vld [vmem:[%s1 + $0x50] sm:$0xff]
        %v346 = vld [vmem:[%s1 + $0x58] sm:$0xff]
        %v347 = vld [vmem:[%s1 + $0x60] sm:$0xff]
        %v348 = vld [vmem:[%s1 + $0x68] sm:$0xff]
        %v349 = vld [vmem:[%s1 + $0x70] sm:$0xff]
        %v350 = vld [vmem:[%s1 + $0x78] sm:$0xff]
        %v351 = vld [vmem:[%s1 + $0x80] sm:$0xff]
        %v352 = vld [vmem:[%s1 + $0x88] sm:$0xff]
        %v353 = vld [vmem:[%s1 + $0x90] sm:$0xff]
        %v354 = vld [vmem:[%s1 + $0x98] sm:$0xff]
        %v355 = vld [vmem:[%s1 + $0xa0] sm:$0xff]
        %v356 = vld [vmem:[%s1 + $0xa8] sm:$0xff]
        %v357 = vld [vmem:[%s1 + $0xb0] sm:$0xff]
        %v358 = vld [vmem:[%s1 + $0xb8] sm:$0xff]
        %v359 = vld [vmem:[%s1 + $0xc0] sm:$0xff]
        %v360 = vld [vmem:[%s1 + $0xc8] sm:$0xff]
        %v361 = vld [vmem:[%s1 + $0xd0] sm:$0xff]
        %v362 = vld [vmem:[%s1 + $0xd8] sm:$0xff]
        %v363 = vld [vmem:[%s1 + $0xe0] sm:$0xff]
        %v364 = vld [vmem:[%s1 + $0xe8] sm:$0xff]
        %v365 = vld [vmem:[%s1 + $0xf0] sm:$0xff]
        %v366 = vld [vmem:[%s1 + $0xf8] sm:$0xff]
        %v367 = vld [vmem:[%s1 + $0x100] sm:$0xff]
        %v368 = vld [vmem:[%s1 + $0x108] sm:$0xff]
        %v369 = vld [vmem:[%s1 + $0x110] sm:$0xff]
        %v370 = vld [vmem:[%s1 + $0x118] sm:$0xff]
        %v371 = vld [vmem:[%s1 + $0x120] sm:$0xff]
        %v372 = vld [vmem:[%s1 + $0x128] sm:$0xff]
        %v373 = vld [vmem:[%s1 + $0x130] sm:$0xff]
        %v374 = vld [vmem:[%s1 + $0x138] sm:$0xff]
        %v375 = vld [vmem:[%s1 + $0x140] sm:$0xff]
        %v376 = vld [vmem:[%s1 + $0x148] sm:$0xff]
        %v377 = vld [vmem:[%s1 + $0x150] sm:$0xff]
        %v378 = vld [vmem:[%s1 + $0x158] sm:$0xff]
        %v379 = vld [vmem:[%s1 + $0x160] sm:$0xff]
        %v380 = vld [vmem:[%s1 + $0x168] sm:$0xff]
        %v381 = vld [vmem:[%s1 + $0x170] sm:$0xff]
        %v382 = vld [vmem:[%s1 + $0x178] sm:$0xff]
        %v383 = vld [vmem:[%s1 + $0x180] sm:$0xff]
        %v384 = vld [vmem:[%s1 + $0x188] sm:$0xff]
        %v385 = vld [vmem:[%s1 + $0x190] sm:$0xff]
        %v386 = vld [vmem:[%s1 + $0x198] sm:$0xff]
        %v387 = vld [vmem:[%s1 + $0x1a0] sm:$0xff]
        %v388 = vld [vmem:[%s1 + $0x1a8] sm:$0xff]
        %v389 = vld [vmem:[%s1 + $0x1b0] sm:$0xff]
        %v390 = vld [vmem:[%s1 + $0x1b8] sm:$0xff]
        %v391 = vld [vmem:[%s1 + $0x1c0] sm:$0xff]
        %v392 = vld [vmem:[%s1 + $0x1c8] sm:$0xff]
        %v393 = vld [vmem:[%s1 + $0x1d0] sm:$0xff]
        %v394 = vld [vmem:[%s1 + $0x1d8] sm:$0xff]
        %v395 = vld [vmem:[%s1 + $0x1e0] sm:$0xff]
        %v396 = vld [vmem:[%s1 + $0x1e8] sm:$0xff]
        %v397 = vld [vmem:[%s1 + $0x1f0] sm:$0xff]
        %v398 = vld [vmem:[%s1 + $0x1f8] sm:$0xff]
        %v399 = vld [vmem:[%s1 + $0x200] sm:$0xff]
        %v400 = vld [vmem:[%s1 + $0x208] sm:$0xff]
        %v401 = vld [vmem:[%s1 + $0x210] sm:$0xff]
        %v402 = vld [vmem:[%s1 + $0x218] sm:$0xff]
        %v403 = vld [vmem:[%s1 + $0x220] sm:$0xff]
        %v404 = vld [vmem:[%s1 + $0x228] sm:$0xff]
        %v405 = vld [vmem:[%s1 + $0x230] sm:$0xff]
        %v406 = vld [vmem:[%s1 + $0x238] sm:$0xff]
        %v407 = vld [vmem:[%s2] sm:$0x1]
        %v409 = vlaneseq
        %v410 = vshrl.u32 %v409, 7
        %v411 = vsub.s32 0, %v410
        %v412 = vrot.slane %v407, %v411
        %vm414 = vcmask 523264
        %v416 = vsel %vm414, %v179, 0
        %v419 = vsel %vm414, %v184, 0
        %v422 = vsel %vm414, %v189, 0
        %v425 = vsel %vm414, %v194, 0
        %v428 = vsel %vm414, %v199, 0
        %v431 = vsel %vm414, %v204, 0
        %v434 = vsel %vm414, %v209, 0
        %v437 = vsel %vm414, %v214, 0
        %v440 = vsel %vm414, %v219, 0
        %v443 = vsel %vm414, %v224, 0
        %v446 = vsel %vm414, %v229, 0
        %v449 = vsel %vm414, %v234, 0
        %v452 = vsel %vm414, %v239, 0
        %v455 = vsel %vm414, %v244, 0
        %v458 = vsel %vm414, %v249, 0
        %v461 = vsel %vm414, %v254, 0
        %v464 = vsel %vm414, %v259, 0
        %v467 = vsel %vm414, %v264, 0
        %v470 = vsel %vm414, %v269, 0
        %v473 = vsel %vm414, %v274, 0
        %v476 = vsel %vm414, %v279, 0
        %v479 = vsel %vm414, %v284, 0
        %v482 = vsel %vm414, %v289, 0
        %v485 = vsel %vm414, %v294, 0
        %v488 = vsel %vm414, %v299, 0
        %v491 = vsel %vm414, %v304, 0
        %v494 = vsel %vm414, %v309, 0
        %v497 = vsel %vm414, %v314, 0
        %v500 = vsel %vm414, %v319, 0
        %v503 = vsel %vm414, %v324, 0
        %v506 = vsel %vm414, %v329, 0
        %v509 = vsel %vm414, %v334, 0
        %511 = vmatprep.subr.mxu0 0.0
        %512 = vmatpush1.msra.mxu0 %v335
        %513 = vmatprep.subr.mxu0 0.0
        %514 = vmatpush1.msra.mxu0 %v336
        %515 = vmatprep.subr.mxu0 0.0
        %516 = vmatpush1.msra.mxu0 %v337
        %517 = vmatprep.subr.mxu0 0.0
        %518 = vmatpush1.msra.mxu0 %v338
        %519 = vmatprep.subr.mxu0 0.0
        %520 = vmatpush1.msra.mxu0 %v339
        %521 = vmatprep.subr.mxu0 0.0
        %522 = vmatpush1.msra.mxu0 %v340
        %523 = vmatprep.subr.mxu0 0.0
        %524 = vmatpush1.msra.mxu0 %v341
        %525 = vmatprep.subr.mxu0 0.0
        %526 = vmatpush1.msra.mxu0 %v342
        %527 = vmatprep.subr.mxu0 0.0
        %528 = vmatpush1.msra.mxu0 %v343
        %529 = vmatprep.subr.mxu0 0.0
        %530 = vmatpush1.msra.mxu0 %v344
        %531 = vmatprep.subr.mxu0 0.0
        %532 = vmatpush1.msra.mxu0 %v345
        %533 = vmatprep.subr.mxu0 0.0
        %534 = vmatpush1.msra.mxu0 %v346
        %535 = vmatprep.subr.mxu0 0.0
        %536 = vmatpush1.msra.mxu0 %v347
        %537 = vmatprep.subr.mxu0 0.0
        %538 = vmatpush1.msra.mxu0 %v348
        %539 = vmatprep.subr.mxu0 0.0
        %540 = vmatpush1.msra.mxu0 %v349
        %541 = vmatprep.subr.mxu0 0.0
        %542 = vmatpush1.msra.mxu0 %v350
        %543 = vmatprep.subr.mxu0 0.0
        %544 = vmatpush1.msra.mxu0 %v351
        %545 = vmatprep.subr.mxu0 0.0
        %546 = vmatpush1.msra.mxu0 %v352
        %547 = vmatprep.subr.mxu0 0.0
        %548 = vmatpush1.msra.mxu0 %v353
        %549 = vmatprep.subr.mxu0 0.0
        %550 = vmatpush1.msra.mxu0 %v354
        %551 = vmatprep.subr.mxu0 0.0
        %552 = vmatpush1.msra.mxu0 %v355
        %553 = vmatprep.subr.mxu0 0.0
        %554 = vmatpush1.msra.mxu0 %v356
        %555 = vmatprep.subr.mxu0 0.0
        %556 = vmatpush1.msra.mxu0 %v357
        %557 = vmatprep.subr.mxu0 0.0
        %558 = vmatpush1.msra.mxu0 %v358
        %559 = vmatprep.subr.mxu0 0.0
        %560 = vmatpush1.msra.mxu0 %v359
        %561 = vmatprep.subr.mxu0 0.0
        %562 = vmatpush1.msra.mxu0 %v360
        %563 = vmatprep.subr.mxu0 0.0
        %564 = vmatpush1.msra.mxu0 %v361
        %565 = vmatprep.subr.mxu0 0.0
        %566 = vmatpush1.msra.mxu0 %v362
        %567 = vmatprep.subr.mxu0 0.0
        %568 = vmatpush1.msra.mxu0 %v363
        %569 = vmatprep.subr.mxu0 0.0
        %570 = vmatpush1.msra.mxu0 %v364
        %571 = vmatprep.subr.mxu0 0.0
        %572 = vmatpush1.msra.mxu0 %v365
        %573 = vmatprep.subr.mxu0 0.0
        %574 = vmatpush1.msra.mxu0 %v366
        %575 = vmatprep.mubr.f32.mxu0 %v176
        %576 = vmatmul.mubr.f32.gmra.mrb[0].mxu0 %v175
        %v577 = vpop.f32.mrb[0].mxu0
        %v578 = vadd.f32 %v412, %v577
        %v579 = vpop.f32.mrb[0].mxu0
        %580 = vmatprep.mubr.f32.mxu0 %v181
        %581 = vmatmul.mubr.f32.gmra.mrb[0].mxu0 %v180
        %v582 = vpop.f32.mrb[0].mxu0
        %v583 = vadd.f32 %v412, %v582
        %v584 = vpop.f32.mrb[0].mxu0
        %585 = vmatprep.mubr.f32.mxu0 %v186
        %586 = vmatmul.mubr.f32.gmra.mrb[0].mxu0 %v185
        %v587 = vpop.f32.mrb[0].mxu0
        %v588 = vadd.f32 %v412, %v587
        %v589 = vpop.f32.mrb[0].mxu0
        %590 = vmatprep.mubr.f32.mxu0 %v191
        %591 = vmatmul.mubr.f32.gmra.mrb[0].mxu0 %v190
        %v592 = vpop.f32.mrb[0].mxu0
        %v593 = vadd.f32 %v412, %v592
        %v594 = vpop.f32.mrb[0].mxu0
        %595 = vmatprep.mubr.f32.mxu0 %v196
        %596 = vmatmul.mubr.f32.gmra.mrb[0].mxu0 %v195
        %v597 = vpop.f32.mrb[0].mxu0
        %v598 = vadd.f32 %v412, %v597
        %v599 = vpop.f32.mrb[0].mxu0
        %600 = vmatprep.mubr.f32.mxu0 %v201
        %601 = vmatmul.mubr.f32.gmra.mrb[0].mxu0 %v200
        %v602 = vpop.f32.mrb[0].mxu0
        %v603 = vadd.f32 %v412, %v602
        %v604 = vpop.f32.mrb[0].mxu0
        %605 = vmatprep.mubr.f32.mxu0 %v206
        %606 = vmatmul.mubr.f32.gmra.mrb[0].mxu0 %v205
        %v607 = vpop.f32.mrb[0].mxu0
        %v608 = vadd.f32 %v412, %v607
        %v609 = vpop.f32.mrb[0].mxu0
        %610 = vmatprep.mubr.f32.mxu0 %v211
        %611 = vmatmul.mubr.f32.gmra.mrb[0].mxu0 %v210
        %v612 = vpop.f32.mrb[0].mxu0
        %v613 = vadd.f32 %v412, %v612
        %v614 = vpop.f32.mrb[0].mxu0
        %615 = vmatprep.mubr.f32.mxu0 %v216
        %616 = vmatmul.mubr.f32.gmra.mrb[0].mxu0 %v215
        %v617 = vpop.f32.mrb[0].mxu0
        %v618 = vadd.f32 %v412, %v617
        %v619 = vpop.f32.mrb[0].mxu0
        %620 = vmatprep.mubr.f32.mxu0 %v221
        %621 = vmatmul.mubr.f32.gmra.mrb[0].mxu0 %v220
        %v622 = vpop.f32.mrb[0].mxu0
        %v623 = vadd.f32 %v412, %v622
        %v624 = vpop.f32.mrb[0].mxu0
        %625 = vmatprep.mubr.f32.mxu0 %v226
        %626 = vmatmul.mubr.f32.gmra.mrb[0].mxu0 %v225
        %v627 = vpop.f32.mrb[0].mxu0
        %v628 = vadd.f32 %v412, %v627
        %v629 = vpop.f32.mrb[0].mxu0
        %630 = vmatprep.mubr.f32.mxu0 %v231
        %631 = vmatmul.mubr.f32.gmra.mrb[0].mxu0 %v230
        %v632 = vpop.f32.mrb[0].mxu0
        %v633 = vadd.f32 %v412, %v632
        %v634 = vpop.f32.mrb[0].mxu0
        %635 = vmatprep.mubr.f32.mxu0 %v236
        %636 = vmatmul.mubr.f32.gmra.mrb[0].mxu0 %v235
        %v637 = vpop.f32.mrb[0].mxu0
        %v638 = vadd.f32 %v412, %v637
        %v639 = vpop.f32.mrb[0].mxu0
        %640 = vmatprep.mubr.f32.mxu0 %v241
        %641 = vmatmul.mubr.f32.gmra.mrb[0].mxu0 %v240
        %v642 = vpop.f32.mrb[0].mxu0
        %v643 = vadd.f32 %v412, %v642
        %v644 = vpop.f32.mrb[0].mxu0
        %645 = vmatprep.mubr.f32.mxu0 %v246
        %646 = vmatmul.mubr.f32.gmra.mrb[0].mxu0 %v245
        %v647 = vpop.f32.mrb[0].mxu0
        %v648 = vadd.f32 %v412, %v647
        %v649 = vpop.f32.mrb[0].mxu0
        %650 = vmatprep.mubr.f32.mxu0 %v251
        %651 = vmatmul.mubr.f32.gmra.mrb[0].mxu0 %v250
        %v652 = vpop.f32.mrb[0].mxu0
        %v653 = vadd.f32 %v412, %v652
        %v654 = vpop.f32.mrb[0].mxu0
        %655 = vmatprep.mubr.f32.mxu0 %v256
        %656 = vmatmul.mubr.f32.gmra.mrb[0].mxu0 %v255
        %v657 = vpop.f32.mrb[0].mxu0
        %v658 = vadd.f32 %v412, %v657
        %v659 = vpop.f32.mrb[0].mxu0
        %660 = vmatprep.mubr.f32.mxu0 %v261
        %661 = vmatmul.mubr.f32.gmra.mrb[0].mxu0 %v260
        %v662 = vpop.f32.mrb[0].mxu0
        %v663 = vadd.f32 %v412, %v662
        %v664 = vpop.f32.mrb[0].mxu0
        %665 = vmatprep.mubr.f32.mxu0 %v266
        %666 = vmatmul.mubr.f32.gmra.mrb[0].mxu0 %v265
        %v667 = vpop.f32.mrb[0].mxu0
        %v668 = vadd.f32 %v412, %v667
        %v669 = vpop.f32.mrb[0].mxu0
        %670 = vmatprep.mubr.f32.mxu0 %v271
        %671 = vmatmul.mubr.f32.gmra.mrb[0].mxu0 %v270
        %v672 = vpop.f32.mrb[0].mxu0
        %v673 = vadd.f32 %v412, %v672
        %v674 = vpop.f32.mrb[0].mxu0
        %675 = vmatprep.mubr.f32.mxu0 %v276
        %676 = vmatmul.mubr.f32.gmra.mrb[0].mxu0 %v275
        %v677 = vpop.f32.mrb[0].mxu0
        %v678 = vadd.f32 %v412, %v677
        %v679 = vpop.f32.mrb[0].mxu0
        %680 = vmatprep.mubr.f32.mxu0 %v281
        %681 = vmatmul.mubr.f32.gmra.mrb[0].mxu0 %v280
        %v682 = vpop.f32.mrb[0].mxu0
        %v683 = vadd.f32 %v412, %v682
        %v684 = vpop.f32.mrb[0].mxu0
        %685 = vmatprep.mubr.f32.mxu0 %v286
        %686 = vmatmul.mubr.f32.gmra.mrb[0].mxu0 %v285
        %v687 = vpop.f32.mrb[0].mxu0
        %v688 = vadd.f32 %v412, %v687
        %v689 = vpop.f32.mrb[0].mxu0
        %690 = vmatprep.mubr.f32.mxu0 %v291
        %691 = vmatmul.mubr.f32.gmra.mrb[0].mxu0 %v290
        %v692 = vpop.f32.mrb[0].mxu0
        %v693 = vadd.f32 %v412, %v692
        %v694 = vpop.f32.mrb[0].mxu0
        %695 = vmatprep.mubr.f32.mxu0 %v296
        %696 = vmatmul.mubr.f32.gmra.mrb[0].mxu0 %v295
        %v697 = vpop.f32.mrb[0].mxu0
        %v698 = vadd.f32 %v412, %v697
        %v699 = vpop.f32.mrb[0].mxu0
        %700 = vmatprep.mubr.f32.mxu0 %v301
        %701 = vmatmul.mubr.f32.gmra.mrb[0].mxu0 %v300
        %v702 = vpop.f32.mrb[0].mxu0
        %v703 = vadd.f32 %v412, %v702
        %v704 = vpop.f32.mrb[0].mxu0
        %705 = vmatprep.mubr.f32.mxu0 %v306
        %706 = vmatmul.mubr.f32.gmra.mrb[0].mxu0 %v305
        %v707 = vpop.f32.mrb[0].mxu0
        %v708 = vadd.f32 %v412, %v707
        %v709 = vpop.f32.mrb[0].mxu0
        %710 = vmatprep.mubr.f32.mxu0 %v311
        %711 = vmatmul.mubr.f32.gmra.mrb[0].mxu0 %v310
        %v712 = vpop.f32.mrb[0].mxu0
        %v713 = vadd.f32 %v412, %v712
        %v714 = vpop.f32.mrb[0].mxu0
        %715 = vmatprep.mubr.f32.mxu0 %v316
        %716 = vmatmul.mubr.f32.gmra.mrb[0].mxu0 %v315
        %v717 = vpop.f32.mrb[0].mxu0
        %v718 = vadd.f32 %v412, %v717
        %v719 = vpop.f32.mrb[0].mxu0
        %720 = vmatprep.mubr.f32.mxu0 %v321
        %721 = vmatmul.mubr.f32.gmra.mrb[0].mxu0 %v320
        %v722 = vpop.f32.mrb[0].mxu0
        %v723 = vadd.f32 %v412, %v722
        %v724 = vpop.f32.mrb[0].mxu0
        %725 = vmatprep.mubr.f32.mxu0 %v326
        %726 = vmatmul.mubr.f32.gmra.mrb[0].mxu0 %v325
        %v727 = vpop.f32.mrb[0].mxu0
        %v728 = vadd.f32 %v412, %v727
        %v729 = vpop.f32.mrb[0].mxu0
        %730 = vmatprep.mubr.f32.mxu0 %v331
        %731 = vmatmul.mubr.f32.gmra.mrb[0].mxu0 %v330
        %v732 = vpop.f32.mrb[0].mxu0
        %v733 = vadd.f32 %v412, %v732
        %v734 = vpop.f32.mrb[0].mxu0
        %735 = vdwg.mxu0
        %736 = vmatprep.subr.mxu0 0.0
        %737 = vmatpush1.msra.mxu0 %v367
        %738 = vmatprep.subr.mxu0 0.0
        %739 = vmatpush1.msra.mxu0 %v368
        %740 = vmatprep.subr.mxu0 0.0
        %741 = vmatpush1.msra.mxu0 %v369
        %742 = vmatprep.subr.mxu0 0.0
        %743 = vmatpush1.msra.mxu0 %v370
        %744 = vmatprep.subr.mxu0 0.0
        %745 = vmatpush1.msra.mxu0 %v371
        %746 = vmatprep.subr.mxu0 0.0
        %747 = vmatpush1.msra.mxu0 %v372
        %748 = vmatprep.subr.mxu0 0.0
        %749 = vmatpush1.msra.mxu0 %v373
        %750 = vmatprep.subr.mxu0 0.0
        %751 = vmatpush1.msra.mxu0 %v374
        %752 = vmatprep.subr.mxu0 0.0
        %753 = vmatpush1.msra.mxu0 %v375
        %754 = vmatprep.subr.mxu0 0.0
        %755 = vmatpush1.msra.mxu0 %v376
        %756 = vmatprep.subr.mxu0 0.0
        %757 = vmatpush1.msra.mxu0 %v377
        %758 = vmatprep.subr.mxu0 0.0
        %759 = vmatpush1.msra.mxu0 %v378
        %760 = vmatprep.subr.mxu0 0.0
        %761 = vmatpush1.msra.mxu0 %v379
        %762 = vmatprep.subr.mxu0 0.0
        %763 = vmatpush1.msra.mxu0 %v380
        %764 = vmatprep.subr.mxu0 0.0
        %765 = vmatpush1.msra.mxu0 %v381
        %766 = vmatprep.subr.mxu0 0.0
        %767 = vmatpush1.msra.mxu0 %v382
        %768 = vmatprep.subr.mxu0 0.0
        %769 = vmatpush1.msra.mxu0 %v383
        %770 = vmatprep.subr.mxu0 0.0
        %771 = vmatpush1.msra.mxu0 %v384
        %772 = vmatprep.subr.mxu0 0.0
        %773 = vmatpush1.msra.mxu0 %v385
        %774 = vmatprep.subr.mxu0 0.0
        %775 = vmatpush1.msra.mxu0 %v386
        %776 = vmatprep.subr.mxu0 0.0
        %777 = vmatpush1.msra.mxu0 %v387
        %778 = vmatprep.subr.mxu0 0.0
        %779 = vmatpush1.msra.mxu0 %v388
        %780 = vmatprep.subr.mxu0 0.0
        %781 = vmatpush1.msra.mxu0 %v389
        %782 = vmatprep.subr.mxu0 0.0
        %783 = vmatpush1.msra.mxu0 %v390
        %784 = vmatprep.subr.mxu0 0.0
        %785 = vmatpush1.msra.mxu0 %v391
        %786 = vmatprep.subr.mxu0 0.0
        %787 = vmatpush1.msra.mxu0 %v392
        %788 = vmatprep.subr.mxu0 0.0
        %789 = vmatpush1.msra.mxu0 %v393
        %790 = vmatprep.subr.mxu0 0.0
        %791 = vmatpush1.msra.mxu0 %v394
        %792 = vmatprep.subr.mxu0 0.0
        %793 = vmatpush1.msra.mxu0 %v395
        %794 = vmatprep.subr.mxu0 0.0
        %795 = vmatpush1.msra.mxu0 %v396
        %796 = vmatprep.subr.mxu0 0.0
        %797 = vmatpush1.msra.mxu0 %v397
        %798 = vmatprep.subr.mxu0 0.0
        %799 = vmatpush1.msra.mxu0 %v398
        %800 = vmatprep.mubr.f32.mxu0 %v178
        %801 = vmatmul.mubr.f32.gmra.mrb[0].mxu0 %v177
        %v802 = vpop.f32.mrb[0].mxu0
        %v803 = vadd.f32 %v578, %v802
        %v804 = vpop.f32.mrb[0].mxu0
        %805 = vmatprep.mubr.f32.mxu0 %v183
        %806 = vmatmul.mubr.f32.gmra.mrb[0].mxu0 %v182
        %v807 = vpop.f32.mrb[0].mxu0
        %v808 = vadd.f32 %v583, %v807
        %v809 = vpop.f32.mrb[0].mxu0
        %810 = vmatprep.mubr.f32.mxu0 %v188
        %811 = vmatmul.mubr.f32.gmra.mrb[0].mxu0 %v187
        %v812 = vpop.f32.mrb[0].mxu0
        %v813 = vadd.f32 %v588, %v812
        %v814 = vpop.f32.mrb[0].mxu0
        %815 = vmatprep.mubr.f32.mxu0 %v193
        %816 = vmatmul.mubr.f32.gmra.mrb[0].mxu0 %v192
        %v817 = vpop.f32.mrb[0].mxu0
        %v818 = vadd.f32 %v593, %v817
        %v819 = vpop.f32.mrb[0].mxu0
        %820 = vmatprep.mubr.f32.mxu0 %v198
        %821 = vmatmul.mubr.f32.gmra.mrb[0].mxu0 %v197
        %v822 = vpop.f32.mrb[0].mxu0
        %v823 = vadd.f32 %v598, %v822
        %v824 = vpop.f32.mrb[0].mxu0
        %825 = vmatprep.mubr.f32.mxu0 %v203
        %826 = vmatmul.mubr.f32.gmra.mrb[0].mxu0 %v202
        %v827 = vpop.f32.mrb[0].mxu0
        %v828 = vadd.f32 %v603, %v827
        %v829 = vpop.f32.mrb[0].mxu0
        %830 = vmatprep.mubr.f32.mxu0 %v208
        %831 = vmatmul.mubr.f32.gmra.mrb[0].mxu0 %v207
        %v832 = vpop.f32.mrb[0].mxu0
        %v833 = vadd.f32 %v608, %v832
        %v834 = vpop.f32.mrb[0].mxu0
        %835 = vmatprep.mubr.f32.mxu0 %v213
        %836 = vmatmul.mubr.f32.gmra.mrb[0].mxu0 %v212
        %v837 = vpop.f32.mrb[0].mxu0
        %v838 = vadd.f32 %v613, %v837
        %v839 = vpop.f32.mrb[0].mxu0
        %840 = vmatprep.mubr.f32.mxu0 %v218
        %841 = vmatmul.mubr.f32.gmra.mrb[0].mxu0 %v217
        %v842 = vpop.f32.mrb[0].mxu0
        %v843 = vadd.f32 %v618, %v842
        %v844 = vpop.f32.mrb[0].mxu0
        %845 = vmatprep.mubr.f32.mxu0 %v223
        %846 = vmatmul.mubr.f32.gmra.mrb[0].mxu0 %v222
        %v847 = vpop.f32.mrb[0].mxu0
        %v848 = vadd.f32 %v623, %v847
        %v849 = vpop.f32.mrb[0].mxu0
        %850 = vmatprep.mubr.f32.mxu0 %v228
        %851 = vmatmul.mubr.f32.gmra.mrb[0].mxu0 %v227
        %v852 = vpop.f32.mrb[0].mxu0
        %v853 = vadd.f32 %v628, %v852
        %v854 = vpop.f32.mrb[0].mxu0
        %855 = vmatprep.mubr.f32.mxu0 %v233
        %856 = vmatmul.mubr.f32.gmra.mrb[0].mxu0 %v232
        %v857 = vpop.f32.mrb[0].mxu0
        %v858 = vadd.f32 %v633, %v857
        %v859 = vpop.f32.mrb[0].mxu0
        %860 = vmatprep.mubr.f32.mxu0 %v238
        %861 = vmatmul.mubr.f32.gmra.mrb[0].mxu0 %v237
        %v862 = vpop.f32.mrb[0].mxu0
        %v863 = vadd.f32 %v638, %v862
        %v864 = vpop.f32.mrb[0].mxu0
        %865 = vmatprep.mubr.f32.mxu0 %v243
        %866 = vmatmul.mubr.f32.gmra.mrb[0].mxu0 %v242
        %v867 = vpop.f32.mrb[0].mxu0
        %v868 = vadd.f32 %v643, %v867
        %v869 = vpop.f32.mrb[0].mxu0
        %870 = vmatprep.mubr.f32.mxu0 %v248
        %871 = vmatmul.mubr.f32.gmra.mrb[0].mxu0 %v247
        %v872 = vpop.f32.mrb[0].mxu0
        %v873 = vadd.f32 %v648, %v872
        %v874 = vpop.f32.mrb[0].mxu0
        %875 = vmatprep.mubr.f32.mxu0 %v253
        %876 = vmatmul.mubr.f32.gmra.mrb[0].mxu0 %v252
        %v877 = vpop.f32.mrb[0].mxu0
        %v878 = vadd.f32 %v653, %v877
        %v879 = vpop.f32.mrb[0].mxu0
        %880 = vmatprep.mubr.f32.mxu0 %v258
        %881 = vmatmul.mubr.f32.gmra.mrb[0].mxu0 %v257
        %v882 = vpop.f32.mrb[0].mxu0
        %v883 = vadd.f32 %v658, %v882
        %v884 = vpop.f32.mrb[0].mxu0
        %885 = vmatprep.mubr.f32.mxu0 %v263
        %886 = vmatmul.mubr.f32.gmra.mrb[0].mxu0 %v262
        %v887 = vpop.f32.mrb[0].mxu0
        %v888 = vadd.f32 %v663, %v887
        %v889 = vpop.f32.mrb[0].mxu0
        %890 = vmatprep.mubr.f32.mxu0 %v268
        %891 = vmatmul.mubr.f32.gmra.mrb[0].mxu0 %v267
        %v892 = vpop.f32.mrb[0].mxu0
        %v893 = vadd.f32 %v668, %v892
        %v894 = vpop.f32.mrb[0].mxu0
        %895 = vmatprep.mubr.f32.mxu0 %v273
        %896 = vmatmul.mubr.f32.gmra.mrb[0].mxu0 %v272
        %v897 = vpop.f32.mrb[0].mxu0
        %v898 = vadd.f32 %v673, %v897
        %v899 = vpop.f32.mrb[0].mxu0
        %900 = vmatprep.mubr.f32.mxu0 %v278
        %901 = vmatmul.mubr.f32.gmra.mrb[0].mxu0 %v277
        %v902 = vpop.f32.mrb[0].mxu0
        %v903 = vadd.f32 %v678, %v902
        %v904 = vpop.f32.mrb[0].mxu0
        %905 = vmatprep.mubr.f32.mxu0 %v283
        %906 = vmatmul.mubr.f32.gmra.mrb[0].mxu0 %v282
        %v907 = vpop.f32.mrb[0].mxu0
        %v908 = vadd.f32 %v683, %v907
        %v909 = vpop.f32.mrb[0].mxu0
        %910 = vmatprep.mubr.f32.mxu0 %v288
        %911 = vmatmul.mubr.f32.gmra.mrb[0].mxu0 %v287
        %v912 = vpop.f32.mrb[0].mxu0
        %v913 = vadd.f32 %v688, %v912
        %v914 = vpop.f32.mrb[0].mxu0
        %915 = vmatprep.mubr.f32.mxu0 %v293
        %916 = vmatmul.mubr.f32.gmra.mrb[0].mxu0 %v292
        %v917 = vpop.f32.mrb[0].mxu0
        %v918 = vadd.f32 %v693, %v917
        %v919 = vpop.f32.mrb[0].mxu0
        %920 = vmatprep.mubr.f32.mxu0 %v298
        %921 = vmatmul.mubr.f32.gmra.mrb[0].mxu0 %v297
        %v922 = vpop.f32.mrb[0].mxu0
        %v923 = vadd.f32 %v698, %v922
        %v924 = vpop.f32.mrb[0].mxu0
        %925 = vmatprep.mubr.f32.mxu0 %v303
        %926 = vmatmul.mubr.f32.gmra.mrb[0].mxu0 %v302
        %v927 = vpop.f32.mrb[0].mxu0
        %v928 = vadd.f32 %v703, %v927
        %v929 = vpop.f32.mrb[0].mxu0
        %930 = vmatprep.mubr.f32.mxu0 %v308
        %931 = vmatmul.mubr.f32.gmra.mrb[0].mxu0 %v307
        %v932 = vpop.f32.mrb[0].mxu0
        %v933 = vadd.f32 %v708, %v932
        %v934 = vpop.f32.mrb[0].mxu0
        %935 = vmatprep.mubr.f32.mxu0 %v313
        %936 = vmatmul.mubr.f32.gmra.mrb[0].mxu0 %v312
        %v937 = vpop.f32.mrb[0].mxu0
        %v938 = vadd.f32 %v713, %v937
        %v939 = vpop.f32.mrb[0].mxu0
        %940 = vmatprep.mubr.f32.mxu0 %v318
        %941 = vmatmul.mubr.f32.gmra.mrb[0].mxu0 %v317
        %v942 = vpop.f32.mrb[0].mxu0
        %v943 = vadd.f32 %v718, %v942
        %v944 = vpop.f32.mrb[0].mxu0
        %945 = vmatprep.mubr.f32.mxu0 %v323
        %946 = vmatmul.mubr.f32.gmra.mrb[0].mxu0 %v322
        %v947 = vpop.f32.mrb[0].mxu0
        %v948 = vadd.f32 %v723, %v947
        %v949 = vpop.f32.mrb[0].mxu0
        %950 = vmatprep.mubr.f32.mxu0 %v328
        %951 = vmatmul.mubr.f32.gmra.mrb[0].mxu0 %v327
        %v952 = vpop.f32.mrb[0].mxu0
        %v953 = vadd.f32 %v728, %v952
        %v954 = vpop.f32.mrb[0].mxu0
        %955 = vmatprep.mubr.f32.mxu0 %v333
        %956 = vmatmul.mubr.f32.gmra.mrb[0].mxu0 %v332
        %v957 = vpop.f32.mrb[0].mxu0
        %v958 = vadd.f32 %v733, %v957
        %v959 = vpop.f32.mrb[0].mxu0
        %960 = vdwg.mxu0
        %961 = vmatprep.subr.mxu0 0.0
        %962 = vmatpush1.msra.mxu0 %v399
        %963 = vmatprep.subr.mxu0 0.0
        %964 = vmatpush1.msra.mxu0 %v400
        %965 = vmatprep.subr.mxu0 0.0
        %966 = vmatpush1.msra.mxu0 %v401
        %967 = vmatprep.subr.mxu0 0.0
        %968 = vmatpush1.msra.mxu0 %v402
        %969 = vmatprep.subr.mxu0 0.0
        %970 = vmatpush1.msra.mxu0 %v403
        %971 = vmatprep.subr.mxu0 0.0
        %972 = vmatpush1.msra.mxu0 %v404
        %973 = vmatprep.subr.mxu0 0.0
        %974 = vmatpush1.msra.mxu0 %v405
        %975 = vmatprep.subr.mxu0 0.0
        %976 = vmatpush1.msra.mxu0 %v406
        %977 = vmatprep.subr.mxu0 0.0
        %978 = vmatpush1.msra.mxu0 0.0
        %979 = vmatprep.subr.mxu0 0.0
        %980 = vmatpush1.msra.mxu0 0.0
        %981 = vmatprep.subr.mxu0 0.0
        %982 = vmatpush1.msra.mxu0 0.0
        %983 = vmatprep.subr.mxu0 0.0
        %984 = vmatpush1.msra.mxu0 0.0
        %985 = vmatprep.subr.mxu0 0.0
        %986 = vmatpush1.msra.mxu0 0.0
        %987 = vmatprep.subr.mxu0 0.0
        %988 = vmatpush1.msra.mxu0 0.0
        %989 = vmatprep.subr.mxu0 0.0
        %990 = vmatpush1.msra.mxu0 0.0
        %991 = vmatprep.subr.mxu0 0.0
        %992 = vmatpush1.msra.mxu0 0.0
        %993 = vmatprep.subr.mxu0 0.0
        %994 = vmatpush1.msra.mxu0 0.0
        %995 = vmatprep.subr.mxu0 0.0
        %996 = vmatpush1.msra.mxu0 0.0
        %997 = vmatprep.subr.mxu0 0.0
        %998 = vmatpush1.msra.mxu0 0.0
        %999 = vmatprep.subr.mxu0 0.0
        %1000 = vmatpush1.msra.mxu0 0.0
        %1001 = vmatprep.subr.mxu0 0.0
        %1002 = vmatpush1.msra.mxu0 0.0
        %1003 = vmatprep.subr.mxu0 0.0
        %1004 = vmatpush1.msra.mxu0 0.0
        %1005 = vmatprep.subr.mxu0 0.0
        %1006 = vmatpush1.msra.mxu0 0.0
        %1007 = vmatprep.subr.mxu0 0.0
        %1008 = vmatpush1.msra.mxu0 0.0
        %1009 = vmatprep.subr.mxu0 0.0
        %1010 = vmatpush1.msra.mxu0 0.0
        %1011 = vmatprep.subr.mxu0 0.0
        %1012 = vmatpush1.msra.mxu0 0.0
        %1013 = vmatprep.subr.mxu0 0.0
        %1014 = vmatpush1.msra.mxu0 0.0
        %1015 = vmatprep.subr.mxu0 0.0
        %1016 = vmatpush1.msra.mxu0 0.0
        %1017 = vmatprep.subr.mxu0 0.0
        %1018 = vmatpush1.msra.mxu0 0.0
        %1019 = vmatprep.subr.mxu0 0.0
        %1020 = vmatpush1.msra.mxu0 0.0
        %1021 = vmatprep.subr.mxu0 0.0
        %1022 = vmatpush1.msra.mxu0 0.0
        %1023 = vmatprep.subr.mxu0 0.0
        %1024 = vmatpush1.msra.mxu0 0.0
        %1025 = vmatprep.mubr.f32.mxu0 0.0
        %1026 = vmatmul.mubr.f32.gmra.mrb[0].mxu0 %v416
        %v1027 = vpop.f32.mrb[0].mxu0
        %v1028 = vadd.f32 %v803, %v1027
        %v1029 = vpop.f32.mrb[0].mxu0
        %1030 = vmatprep.mubr.f32.mxu0 0.0
        %1031 = vmatmul.mubr.f32.gmra.mrb[0].mxu0 %v419
        %v1032 = vpop.f32.mrb[0].mxu0
        %v1033 = vadd.f32 %v808, %v1032
        %v1034 = vpop.f32.mrb[0].mxu0
        %1035 = vmatprep.mubr.f32.mxu0 0.0
        %1036 = vmatmul.mubr.f32.gmra.mrb[0].mxu0 %v422
        %v1037 = vpop.f32.mrb[0].mxu0
        %v1038 = vadd.f32 %v813, %v1037
        %v1039 = vpop.f32.mrb[0].mxu0
        %1040 = vmatprep.mubr.f32.mxu0 0.0
        %1041 = vmatmul.mubr.f32.gmra.mrb[0].mxu0 %v425
        %v1042 = vpop.f32.mrb[0].mxu0
        %v1043 = vadd.f32 %v818, %v1042
        %v1044 = vpop.f32.mrb[0].mxu0
        %1045 = vmatprep.mubr.f32.mxu0 0.0
        %1046 = vmatmul.mubr.f32.gmra.mrb[0].mxu0 %v428
        %v1047 = vpop.f32.mrb[0].mxu0
        %v1048 = vadd.f32 %v823, %v1047
        %v1049 = vpop.f32.mrb[0].mxu0
        %1050 = vmatprep.mubr.f32.mxu0 0.0
        %1051 = vmatmul.mubr.f32.gmra.mrb[0].mxu0 %v431
        %v1052 = vpop.f32.mrb[0].mxu0
        %v1053 = vadd.f32 %v828, %v1052
        %v1054 = vpop.f32.mrb[0].mxu0
        %1055 = vmatprep.mubr.f32.mxu0 0.0
        %1056 = vmatmul.mubr.f32.gmra.mrb[0].mxu0 %v434
        %v1057 = vpop.f32.mrb[0].mxu0
        %v1058 = vadd.f32 %v833, %v1057
        %v1059 = vpop.f32.mrb[0].mxu0
        %1060 = vmatprep.mubr.f32.mxu0 0.0
        %1061 = vmatmul.mubr.f32.gmra.mrb[0].mxu0 %v437
        %v1062 = vpop.f32.mrb[0].mxu0
        %v1063 = vadd.f32 %v838, %v1062
        %v1064 = vpop.f32.mrb[0].mxu0
        %1065 = vmatprep.mubr.f32.mxu0 0.0
        %1066 = vmatmul.mubr.f32.gmra.mrb[0].mxu0 %v440
        %v1067 = vpop.f32.mrb[0].mxu0
        %v1068 = vadd.f32 %v843, %v1067
        %v1069 = vpop.f32.mrb[0].mxu0
        %1070 = vmatprep.mubr.f32.mxu0 0.0
        %1071 = vmatmul.mubr.f32.gmra.mrb[0].mxu0 %v443
        %v1072 = vpop.f32.mrb[0].mxu0
        %v1073 = vadd.f32 %v848, %v1072
        %v1074 = vpop.f32.mrb[0].mxu0
        %1075 = vmatprep.mubr.f32.mxu0 0.0
        %1076 = vmatmul.mubr.f32.gmra.mrb[0].mxu0 %v446
        %v1077 = vpop.f32.mrb[0].mxu0
        %v1078 = vadd.f32 %v853, %v1077
        %v1079 = vpop.f32.mrb[0].mxu0
        %1080 = vmatprep.mubr.f32.mxu0 0.0
        %1081 = vmatmul.mubr.f32.gmra.mrb[0].mxu0 %v449
        %v1082 = vpop.f32.mrb[0].mxu0
        %v1083 = vadd.f32 %v858, %v1082
        %v1084 = vpop.f32.mrb[0].mxu0
        %1085 = vmatprep.mubr.f32.mxu0 0.0
        %1086 = vmatmul.mubr.f32.gmra.mrb[0].mxu0 %v452
        %v1087 = vpop.f32.mrb[0].mxu0
        %v1088 = vadd.f32 %v863, %v1087
        %v1089 = vpop.f32.mrb[0].mxu0
        %1090 = vmatprep.mubr.f32.mxu0 0.0
        %1091 = vmatmul.mubr.f32.gmra.mrb[0].mxu0 %v455
        %v1092 = vpop.f32.mrb[0].mxu0
        %v1093 = vadd.f32 %v868, %v1092
        %v1094 = vpop.f32.mrb[0].mxu0
        %1095 = vmatprep.mubr.f32.mxu0 0.0
        %1096 = vmatmul.mubr.f32.gmra.mrb[0].mxu0 %v458
        %v1097 = vpop.f32.mrb[0].mxu0
        %v1098 = vadd.f32 %v873, %v1097
        %v1099 = vpop.f32.mrb[0].mxu0
        %1100 = vmatprep.mubr.f32.mxu0 0.0
        %1101 = vmatmul.mubr.f32.gmra.mrb[0].mxu0 %v461
        %v1102 = vpop.f32.mrb[0].mxu0
        %v1103 = vadd.f32 %v878, %v1102
        %v1104 = vpop.f32.mrb[0].mxu0
        %1105 = vmatprep.mubr.f32.mxu0 0.0
        %1106 = vmatmul.mubr.f32.gmra.mrb[0].mxu0 %v464
        %v1107 = vpop.f32.mrb[0].mxu0
        %v1108 = vadd.f32 %v883, %v1107
        %v1109 = vpop.f32.mrb[0].mxu0
        %1110 = vmatprep.mubr.f32.mxu0 0.0
        %1111 = vmatmul.mubr.f32.gmra.mrb[0].mxu0 %v467
        %v1112 = vpop.f32.mrb[0].mxu0
        %v1113 = vadd.f32 %v888, %v1112
        %v1114 = vpop.f32.mrb[0].mxu0
        %1115 = vmatprep.mubr.f32.mxu0 0.0
        %1116 = vmatmul.mubr.f32.gmra.mrb[0].mxu0 %v470
        %v1117 = vpop.f32.mrb[0].mxu0
        %v1118 = vadd.f32 %v893, %v1117
        %v1119 = vpop.f32.mrb[0].mxu0
        %1120 = vmatprep.mubr.f32.mxu0 0.0
        %1121 = vmatmul.mubr.f32.gmra.mrb[0].mxu0 %v473
        %v1122 = vpop.f32.mrb[0].mxu0
        %v1123 = vadd.f32 %v898, %v1122
        %v1124 = vpop.f32.mrb[0].mxu0
        %1125 = vmatprep.mubr.f32.mxu0 0.0
        %1126 = vmatmul.mubr.f32.gmra.mrb[0].mxu0 %v476
        %v1127 = vpop.f32.mrb[0].mxu0
        %v1128 = vadd.f32 %v903, %v1127
        %v1129 = vpop.f32.mrb[0].mxu0
        %1130 = vmatprep.mubr.f32.mxu0 0.0
        %1131 = vmatmul.mubr.f32.gmra.mrb[0].mxu0 %v479
        %v1132 = vpop.f32.mrb[0].mxu0
        %v1133 = vadd.f32 %v908, %v1132
        %v1134 = vpop.f32.mrb[0].mxu0
        %1135 = vmatprep.mubr.f32.mxu0 0.0
        %1136 = vmatmul.mubr.f32.gmra.mrb[0].mxu0 %v482
        %v1137 = vpop.f32.mrb[0].mxu0
        %v1138 = vadd.f32 %v913, %v1137
        %v1139 = vpop.f32.mrb[0].mxu0
        %1140 = vmatprep.mubr.f32.mxu0 0.0
        %1141 = vmatmul.mubr.f32.gmra.mrb[0].mxu0 %v485
        %v1142 = vpop.f32.mrb[0].mxu0
        %v1143 = vadd.f32 %v918, %v1142
        %v1144 = vpop.f32.mrb[0].mxu0
        %1145 = vmatprep.mubr.f32.mxu0 0.0
        %1146 = vmatmul.mubr.f32.gmra.mrb[0].mxu0 %v488
        %v1147 = vpop.f32.mrb[0].mxu0
        %v1148 = vadd.f32 %v923, %v1147
        %v1149 = vpop.f32.mrb[0].mxu0
        %1150 = vmatprep.mubr.f32.mxu0 0.0
        %1151 = vmatmul.mubr.f32.gmra.mrb[0].mxu0 %v491
        %v1152 = vpop.f32.mrb[0].mxu0
        %v1153 = vadd.f32 %v928, %v1152
        %v1154 = vpop.f32.mrb[0].mxu0
        %1155 = vmatprep.mubr.f32.mxu0 0.0
        %1156 = vmatmul.mubr.f32.gmra.mrb[0].mxu0 %v494
        %v1157 = vpop.f32.mrb[0].mxu0
        %v1158 = vadd.f32 %v933, %v1157
        %v1159 = vpop.f32.mrb[0].mxu0
        %1160 = vmatprep.mubr.f32.mxu0 0.0
        %1161 = vmatmul.mubr.f32.gmra.mrb[0].mxu0 %v497
        %v1162 = vpop.f32.mrb[0].mxu0
        %v1163 = vadd.f32 %v938, %v1162
        %v1164 = vpop.f32.mrb[0].mxu0
        %1165 = vmatprep.mubr.f32.mxu0 0.0
        %1166 = vmatmul.mubr.f32.gmra.mrb[0].mxu0 %v500
        %v1167 = vpop.f32.mrb[0].mxu0
        %v1168 = vadd.f32 %v943, %v1167
        %v1169 = vpop.f32.mrb[0].mxu0
        %1170 = vmatprep.mubr.f32.mxu0 0.0
        %1171 = vmatmul.mubr.f32.gmra.mrb[0].mxu0 %v503
        %v1172 = vpop.f32.mrb[0].mxu0
        %v1173 = vadd.f32 %v948, %v1172
        %v1174 = vpop.f32.mrb[0].mxu0
        %1175 = vmatprep.mubr.f32.mxu0 0.0
        %1176 = vmatmul.mubr.f32.gmra.mrb[0].mxu0 %v506
        %v1177 = vpop.f32.mrb[0].mxu0
        %v1178 = vadd.f32 %v953, %v1177
        %v1179 = vpop.f32.mrb[0].mxu0
        %1180 = vmatprep.mubr.f32.mxu0 0.0
        %1181 = vmatmul.mubr.f32.gmra.mrb[0].mxu0 %v509
        %v1182 = vpop.f32.mrb[0].mxu0
        %v1183 = vadd.f32 %v958, %v1182
        %v1184 = vpop.f32.mrb[0].mxu0
        %1185 = vdwg.mxu0
        %v1186 = vmax.f32 %v1028, 0.0
        %v1187 = vmax.f32 %v1033, 0.0
        %v1188 = vmax.f32 %v1038, 0.0
        %v1189 = vmax.f32 %v1043, 0.0
        %v1190 = vmax.f32 %v1048, 0.0
        %v1191 = vmax.f32 %v1053, 0.0
        %v1192 = vmax.f32 %v1058, 0.0
        %v1193 = vmax.f32 %v1063, 0.0
        %v1194 = vmax.f32 %v1068, 0.0
        %v1195 = vmax.f32 %v1073, 0.0
        %v1196 = vmax.f32 %v1078, 0.0
        %v1197 = vmax.f32 %v1083, 0.0
        %v1198 = vmax.f32 %v1088, 0.0
        %v1199 = vmax.f32 %v1093, 0.0
        %v1200 = vmax.f32 %v1098, 0.0
        %v1201 = vmax.f32 %v1103, 0.0
        %v1202 = vmax.f32 %v1108, 0.0
        %v1203 = vmax.f32 %v1113, 0.0
        %v1204 = vmax.f32 %v1118, 0.0
        %v1205 = vmax.f32 %v1123, 0.0
        %v1206 = vmax.f32 %v1128, 0.0
        %v1207 = vmax.f32 %v1133, 0.0
        %v1208 = vmax.f32 %v1138, 0.0
        %v1209 = vmax.f32 %v1143, 0.0
        %v1210 = vmax.f32 %v1148, 0.0
        %v1211 = vmax.f32 %v1153, 0.0
        %v1212 = vmax.f32 %v1158, 0.0
        %v1213 = vmax.f32 %v1163, 0.0
        %v1214 = vmax.f32 %v1168, 0.0
        %v1215 = vmax.f32 %v1173, 0.0
        %v1216 = vmax.f32 %v1178, 0.0
        %v1217 = vmax.f32 %v1183, 0.0
        %1218 = vst.msk [vmem:[%s166] sm:$0xff] %vm414, %v1186
        %1219 = vst.msk [vmem:[%s166 + $0x8] sm:$0xff] %vm414, %v1187
        %1220 = vst.msk [vmem:[%s166 + $0x10] sm:$0xff] %vm414, %v1188
        %1221 = vst.msk [vmem:[%s166 + $0x18] sm:$0xff] %vm414, %v1189
        %1222 = vst.msk [vmem:[%s166 + $0x20] sm:$0xff] %vm414, %v1190
        %1223 = vst.msk [vmem:[%s166 + $0x28] sm:$0xff] %vm414, %v1191
        %1224 = vst.msk [vmem:[%s166 + $0x30] sm:$0xff] %vm414, %v1192
        %1225 = vst.msk [vmem:[%s166 + $0x38] sm:$0xff] %vm414, %v1193
        %1226 = vst.msk [vmem:[%s166 + $0x40] sm:$0xff] %vm414, %v1194
        %1227 = vst.msk [vmem:[%s166 + $0x48] sm:$0xff] %vm414, %v1195
        %1228 = vst.msk [vmem:[%s166 + $0x50] sm:$0xff] %vm414, %v1196
        %1229 = vst.msk [vmem:[%s166 + $0x58] sm:$0xff] %vm414, %v1197
        %1230 = vst.msk [vmem:[%s166 + $0x60] sm:$0xff] %vm414, %v1198
        %1231 = vst.msk [vmem:[%s166 + $0x68] sm:$0xff] %vm414, %v1199
        %1232 = vst.msk [vmem:[%s166 + $0x70] sm:$0xff] %vm414, %v1200
        %1233 = vst.msk [vmem:[%s166 + $0x78] sm:$0xff] %vm414, %v1201
        %1234 = vst.msk [vmem:[%s166 + $0x80] sm:$0xff] %vm414, %v1202
        %1235 = vst.msk [vmem:[%s166 + $0x88] sm:$0xff] %vm414, %v1203
        %1236 = vst.msk [vmem:[%s166 + $0x90] sm:$0xff] %vm414, %v1204
        %1237 = vst.msk [vmem:[%s166 + $0x98] sm:$0xff] %vm414, %v1205
        %1238 = vst.msk [vmem:[%s166 + $0xa0] sm:$0xff] %vm414, %v1206
        %1239 = vst.msk [vmem:[%s166 + $0xa8] sm:$0xff] %vm414, %v1207
        %1240 = vst.msk [vmem:[%s166 + $0xb0] sm:$0xff] %vm414, %v1208
        %1241 = vst.msk [vmem:[%s166 + $0xb8] sm:$0xff] %vm414, %v1209
        %1242 = vst.msk [vmem:[%s166 + $0xc0] sm:$0xff] %vm414, %v1210
        %1243 = vst.msk [vmem:[%s166 + $0xc8] sm:$0xff] %vm414, %v1211
        %1244 = vst.msk [vmem:[%s166 + $0xd0] sm:$0xff] %vm414, %v1212
        %1245 = vst.msk [vmem:[%s166 + $0xd8] sm:$0xff] %vm414, %v1213
        %1246 = vst.msk [vmem:[%s166 + $0xe0] sm:$0xff] %vm414, %v1214
        %1247 = vst.msk [vmem:[%s166 + $0xe8] sm:$0xff] %vm414, %v1215
        %1248 = vst.msk [vmem:[%s166 + $0xf0] sm:$0xff] %vm414, %v1216
        %1249 = vst.msk [vmem:[%s166 + $0xf8] sm:$0xff] %vm414, %v1217
        %s1250 = sand.u32 %s93, 1
        %s1251 = scalar_lea.sflag [#allocation3], %s1250
        %s1252 = sand.u32 %s93, 1
        %s1253 = smul.addr %s1252, 256
        %s1254 = scalar_lea.vmem [#allocation2], %s1253
        // Predicated region
        $region33: #{encoder_layers_forward.3} parent=31 // pred_check
          %p1255 = pneg %p103
        $region34: #{encoder_layers_forward.3} parent=31 // pred_check_branch
          %1257 = sbr.rel (%p1255) target = $region36
        $region35: #{encoder_layers_forward.3} parent=31 // pred_region
          %s1258 = smul.u32 32, %s17
          %s1260 = ssub.s32 4096, 4096
          %1261 = vsyncadd %s1251, %s1260
          %s1262 = smul.addr %s1258, 128
          %s1263 = scalar_lea.hbm %s3, %s1262
          %s1264 = sshll.u32 %s1254, 4
          %s1265 = int_to_ptr.vmem [resolvable:$true] %s1264
          %1270 = dma.vmem_to_hbm [thread:$0]  %s1265, 4096, %s1263, %s1251, 128, 128, 8
        $region36: #{encoder_layers_forward.3} parent=31 // pred_fallthru
          _
      $region32: #{encoder_layers_forward.3} parent=5 // pred_fallthru
        _
      %p1271 = scmp.le.s32.totalorder 2, %s12
      // Predicated region
      $region37: #{encoder_layers_forward.3} parent=5 // pred_check
        %p1272 = pneg %p1271
      $region38: #{encoder_layers_forward.3} parent=5 // pred_check_branch
        %1274 = sbr.rel (%p1272) target = $region40
      $region39: #{encoder_layers_forward.3} parent=5 // pred_region
        %s1275 = ssub.s32 %s12, 2
        // Predicated region
        $region41: #{encoder_layers_forward.3} parent=39 // pred_check
          %p1276 = pneg %p109
        $region42: #{encoder_layers_forward.3} parent=39 // pred_check_branch
          %1278 = sbr.rel (%p1276) target = $region44
        $region43: #{encoder_layers_forward.3} parent=39 // pred_region
          %s1279 = sand.u32 %s94, 1
          %s1280 = scalar_lea.sflag [#allocation3], %s1279
          %s1281 = sand.u32 %s94, 1
          %s1282 = smul.addr %s1281, 256
          %s1283 = scalar_lea.vmem [#allocation2], %s1282
          %1284 = dma.done %s1280, 4096
        $region44: #{encoder_layers_forward.3} parent=39 // pred_fallthru
          _
      $region40: #{encoder_layers_forward.3} parent=5 // pred_fallthru
        _
    $region6: #{encoder_layers_forward.3} parent=1 // loop_footer
      %s16 = sadd.s32 1, %s12
    $region7: #{encoder_layers_forward.3} parent=1 // loop_footer_branch
      %11 = sbr.rel target = $region3
    $region8: #{encoder_layers_forward.3} parent=1 // loop_exit
      _
    %1285 = vsyncpa [#allocation3], 1
    %s1286 = scalar_lea.sflag [#allocation3], 1
    %1287 = vsyncpa %s1286, 1

</llo_original>
